<compile_context>
chip_gen: v7x
topology: tpu7x:2x2x1
jax: 0.10.0
libtpu: 0.0.40
codegen_flags: <defaults>
</compile_context>

<pallas_src>
import jax
import jax.numpy as jnp
from jax.experimental import pallas as pl
from jax.experimental.pallas import tpu as pltpu

IN_FEATURES = 784
OUT_FEATURES = 784


def _round_up(x, m):
    return (x + m - 1) // m * m


def linear_kernel(x_ref, w_ref, b_ref, o_ref):
    # x_ref: (TILE_B, 784) f32    w_ref: (784, 784) bf16
    # b_ref: (1, 784) f32         o_ref: (TILE_B, 784) f32 (or bf16)
    x_bf16 = x_ref[...].astype(jnp.bfloat16)          # in-kernel cast (VPU)
    acc = jnp.dot(x_bf16, w_ref[...], preferred_element_type=jnp.float32)
    o_ref[...] = (acc + b_ref[...]).astype(o_ref.dtype)


def prepare_params(weight, bias):
    """One-time param prep (done at init, NOT per forward call).

    weight: (784, 784) PyTorch layout [out_features, in_features], f32
    bias:   (784,) f32
    returns:
      wt:      (784, 784) bf16  -- transposed to [in, out] for x @ W
      bias_2d: (1, 784)   f32
    """
    # NOTE: bf16 weights; if bit-level parity with f32 nn.Linear is required,
    # keep an f32-weight path (costs 2x weight DMA only).
    wt = weight.T.astype(jnp.bfloat16)
    bias_2d = bias.astype(jnp.float32).reshape(1, OUT_FEATURES)
    return wt, bias_2d


def _pick_tile_b(b):
    if b <= 128:
        # Tiny batch: single grid step, layout-friendly sublane multiple.
        # Weight-DMA bound regardless of the exact tile here.
        return _round_up(max(b, 8), 16)
    if b <= 1024:
        # Ensure >= 2 grid steps so both v7x TensorCores get a share of the
        # batch; 128-granular for the MXU M dimension.
        return min(512, _round_up(pl.cdiv(b, 2), 128))
    return 512


def anime_model_forward(x, wt, bias_2d, out_dtype=jnp.float32):
    """Forward pass of AnimeModelArchitecture.

    x:       (B, ...) with prod(...) == 784 (e.g. (B, 1, 28, 28) NCHW)
    wt:      (784, 784) bf16 from prepare_params
    bias_2d: (1, 784)   f32  from prepare_params
    returns  (B, 784) in out_dtype (default float32)
    """
    b = x.shape[0]
    x2d = x.reshape(b, -1)                  # x.view(x.size(0), -1)
    assert x2d.shape[1] == IN_FEATURES
    x2d = x2d.astype(jnp.float32)           # stays f32; bf16 cast is in-kernel

    tile_b = _pick_tile_b(b)
    grid = (pl.cdiv(b, tile_b),)            # ragged last block handled by Pallas

    flops = 2 * b * IN_FEATURES * OUT_FEATURES
    bytes_accessed = (x2d.size * 4                                   # f32 activations (read once)
                      + wt.size * 2                                  # bf16 resident weight
                      + bias_2d.size * 4                             # f32 bias
                      + b * OUT_FEATURES * jnp.dtype(out_dtype).itemsize)  # output

    out = pl.pallas_call(
        linear_kernel,
        out_shape=jax.ShapeDtypeStruct((b, OUT_FEATURES), out_dtype),
        grid=grid,
        in_specs=[
            pl.BlockSpec((tile_b, IN_FEATURES), lambda i: (i, 0)),
            pl.BlockSpec((IN_FEATURES, OUT_FEATURES), lambda i: (0, 0)),  # resident
            pl.BlockSpec((1, OUT_FEATURES), lambda i: (0, 0)),            # resident
        ],
        out_specs=pl.BlockSpec((tile_b, OUT_FEATURES), lambda i: (i, 0)),
        compiler_params=pltpu.CompilerParams(
            dimension_semantics=("parallel",),   # batch axis shards across TCs (v7x)
            vmem_limit_bytes=32 << 20,           # safe on v5e/v6e/v7x; ~9 MiB used
        ),
        cost_estimate=pl.CostEstimate(
            flops=flops, transcendentals=0, bytes_accessed=bytes_accessed),
    )(x2d, wt, bias_2d)

    return out


def init_params(key):
    # Deterministic init mimicking nn.Linear default: U(-1/sqrt(in), 1/sqrt(in)).
    kw, kb = jax.random.split(key)
    bound = 1.0 / jnp.sqrt(jnp.float32(IN_FEATURES))
    weight = jax.random.uniform(
        kw, (OUT_FEATURES, IN_FEATURES), jnp.float32, -bound, bound)
    bias = jax.random.uniform(kb, (OUT_FEATURES,), jnp.float32, -bound, bound)
    return weight, bias


if __name__ == "__main__":
    key = jax.random.PRNGKey(0)
    k_x, k_p = jax.random.split(key)

    # Small deterministic input consistent with the 784-feature flatten:
    # batch=2, NCHW image (2, 1, 28, 28).
    x = jax.random.normal(k_x, (2, 1, 28, 28), jnp.float32)
    weight, bias = init_params(k_p)

    # One-time param prep (transpose / bf16 cast hoisted out of the fwd path).
    wt, bias_2d = prepare_params(weight, bias)

    y = anime_model_forward(x, wt, bias_2d)
    y = jax.block_until_ready(y)

    # Reference in plain JAX f32 (same math as torch: x_flat @ W.T + b).
    # Tolerance accounts for bf16 MXU operands with f32 accumulation.
    y_ref = x.reshape(2, -1) @ weight.T + bias
    assert y.shape == (2, OUT_FEATURES)
    assert y.dtype == jnp.float32
    assert jnp.allclose(y, y_ref, atol=5e-2, rtol=5e-2)

    print("KERNEL_OK")
</pallas_src>

<mosaic_0001>
module attributes {stable_mosaic.version = 11 : i64} {
  func.func @linear_kernel(%arg0: i32, %arg1: memref<16x784xf32, #tpu.memory_space<vmem>>, %arg2: memref<784x784xbf16, #tpu.memory_space<vmem>>, %arg3: memref<1x784xf32, #tpu.memory_space<vmem>>, %arg4: memref<16x784xf32, #tpu.memory_space<vmem>>) attributes {dimension_semantics = [#tpu.dimension_semantics<parallel>], iteration_bounds = array<i64: 1>, scalar_prefetch = 0 : i64, scratch_operands = 0 : i64, tpu.core_type = #tpu.core_type<tc>, window_params = [{transform_indices = @transform_0, window_bounds = array<i64: 16, 784>}, {pipeline_mode = #tpu.pipeline_mode<synchronous>, transform_indices = @transform_1, window_bounds = array<i64: 784, 784>}, {pipeline_mode = #tpu.pipeline_mode<synchronous>, transform_indices = @transform_2, window_bounds = array<i64: 1, 784>}, {transform_indices = @transform_3, window_bounds = array<i64: 16, 784>}]} {
    %c0 = arith.constant 0 : index
    %c0_0 = arith.constant 0 : index
    %0 = vector.load %arg1[%c0, %c0_0] : memref<16x784xf32, #tpu.memory_space<vmem>>, vector<16x784xf32>
    %1 = arith.truncf %0 : vector<16x784xf32> to vector<16x784xbf16>
    %c0_1 = arith.constant 0 : index
    %c0_2 = arith.constant 0 : index
    %2 = vector.load %arg2[%c0_1, %c0_2] : memref<784x784xbf16, #tpu.memory_space<vmem>>, vector<784x784xbf16>
    %cst = arith.constant dense<0.000000e+00> : vector<16x784xf32>
    %3 = tpu.matmul %1, %2, %cst {dimension_numbers = #tpu.dot_dimension_numbers<[1], [0], [0], [1], [0, 0, 1, 1], [], []>} : vector<16x784xbf16>, vector<784x784xbf16>, vector<16x784xf32> -> vector<16x784xf32>
    %c0_3 = arith.constant 0 : index
    %c0_4 = arith.constant 0 : index
    %4 = vector.load %arg3[%c0_3, %c0_4] : memref<1x784xf32, #tpu.memory_space<vmem>>, vector<1x784xf32>
    %5 = vector.broadcast %4 : vector<1x784xf32> to vector<16x784xf32>
    %6 = arith.addf %3, %5 : vector<16x784xf32>
    %c0_5 = arith.constant 0 : index
    %c0_6 = arith.constant 0 : index
    %7 = vector.load %arg4[%c0_5, %c0_6] : memref<16x784xf32, #tpu.memory_space<vmem>>, vector<16x784xf32>
    tpu.vector_store %arg4[%c0_5, %c0_6], %6 {strides = array<i32>} : memref<16x784xf32, #tpu.memory_space<vmem>>, vector<16x784xf32>,
    return
  }
  func.func @transform_0(%arg0: i32) -> (i32, i32) {
    %c0_i32 = arith.constant 0 : i32
    %c0_i32_0 = arith.constant 0 : i32
    return %arg0, %c0_i32 : i32, i32
  }
  func.func @transform_1(%arg0: i32) -> (i32, i32) {
    %c0_i32 = arith.constant 0 : i32
    %c0_i32_0 = arith.constant 0 : i32
    %c0_i32_1 = arith.constant 0 : i32
    return %c0_i32, %c0_i32_0 : i32, i32
  }
  func.func @transform_2(%arg0: i32) -> (i32, i32) {
    %c0_i32 = arith.constant 0 : i32
    %c0_i32_0 = arith.constant 0 : i32
    %c0_i32_1 = arith.constant 0 : i32
    return %c0_i32, %c0_i32_0 : i32, i32
  }
  func.func @transform_3(%arg0: i32) -> (i32, i32) {
    %c0_i32 = arith.constant 0 : i32
    %c0_i32_0 = arith.constant 0 : i32
    return %arg0, %c0_i32 : i32, i32
  }
}

</mosaic_0001>

<llo_original>
// kernel: tpu_custom_call.1
$region0: #{tpu_custom_call.1}
  #allocation0 [shape = 'u32[]', space=smem, size = 0x4, offset = 0x4, fixed_abs, tag = 'smem constant byte address 0x4 - core index']
  #allocation1 [shape = 'u32[144,128]{1,0:T(1,128)}', space=vmem, size = 0x12000, scoped, tag = 'internal scratch']
  %s0 = inlined_call_operand.hbm [shape: f32[2,784], index: 0, kind: input, shape index: {}]
  %s1 = inlined_call_operand.hbm [shape: bf16[784,784], index: 1, kind: input, shape index: {}]
  %s2 = inlined_call_operand.hbm [shape: f32[1,784], index: 2, kind: input, shape index: {}]
  %s3 = inlined_call_operand.hbm [shape: f32[2,784], index: 3, kind: output, shape index: {}]
  %s4 = sld [smem:[#allocation0]]
  $region34: #{tpu_custom_call.1} parent=0
    _
  %s6 = ssub.s32 1, %s4
  %s7 = scalar_select 0, %s6, %s4
  $region1: #{tpu_custom_call.1} parent=0
    #allocation2 [shape = 'u8[57344]{0}', space=vmem, size = 0xe000, scoped, tag = 'input window, operand 0, single buffered']
    #allocation3 [shape = 's32[1]{0}', space=sflag, size = 0x4, scoped, tag = 'scoped memory for tpu_custom_call.1']
    #allocation4 [shape = 's32[1]{0}', space=sflag, size = 0x4, scoped, tag = 'scoped memory for tpu_custom_call.1']
    #allocation5 [shape = 'u8[1404928]{0}', space=vmem, size = 0x157000, scoped, tag = 'input window, operand 1, single buffered']
    #allocation6 [shape = 's32[1]{0}', space=sflag, size = 0x4, scoped, tag = 'scoped memory for tpu_custom_call.1']
    #allocation7 [shape = 'u8[3584]{0}', space=vmem, size = 0x1000, scoped, tag = 'input window, operand 2, single buffered']
    #allocation8 [shape = 'u8[57344]{0}', space=vmem, size = 0xe000, scoped, tag = 'output window, operand 0, single buffered']
    %8 = vsyncpa [#allocation3], 0
    %9 = vsyncpa [#allocation6], 0
    %10 = vsyncpa [#allocation4], 0
    // Predicated region
    $region2: #{tpu_custom_call.1} parent=1 // pred_check
      _
    $region3: #{tpu_custom_call.1} parent=1 // pred_check_branch
      %12 = sbr.rel (0) target = $region5
    $region4: #{tpu_custom_call.1} parent=1 // pred_region
      %s14 = ssub.s32 1792, 224
      %15 = vsyncadd [#allocation3], %s14
      %s16 = sshll.u32 [#allocation2], 4
      %s17 = int_to_ptr.vmem [resolvable:$true] %s16
      %22 = dma.hbm_to_vmem [thread:$0]  %s0, 224, %s17, [#allocation3], 224, 224, 14
    $region5: #{tpu_custom_call.1} parent=1 // pred_fallthru
      _
    // Predicated region
    $region6: #{tpu_custom_call.1} parent=1 // pred_check
      _
    $region7: #{tpu_custom_call.1} parent=1 // pred_check_branch
      %24 = sbr.rel (0) target = $region9
    $region8: #{tpu_custom_call.1} parent=1 // pred_region
      %s26 = ssub.s32 43904, 43904
      %27 = vsyncadd [#allocation6], %s26
      %s28 = sshll.u32 [#allocation5], 4
      %s29 = int_to_ptr.vmem [resolvable:$true] %s28
      %34 = dma.hbm_to_vmem [thread:$0]  %s1, 43904, %s29, [#allocation6], 448, 448, 28
    $region9: #{tpu_custom_call.1} parent=1 // pred_fallthru
      _
    // Predicated region
    $region10: #{tpu_custom_call.1} parent=1 // pred_check
      _
    $region11: #{tpu_custom_call.1} parent=1 // pred_check_branch
      %36 = sbr.rel (0) target = $region13
    $region12: #{tpu_custom_call.1} parent=1 // pred_region
      %s38 = ssub.s32 112, 112
      %39 = vsyncadd [#allocation6], %s38
      %s41 = sshll.u32 [#allocation7], 4
      %s42 = int_to_ptr.vmem [resolvable:$true] %s41
      %44 = dma.hbm_to_vmem [thread:$0]  %s2, 112, %s42, [#allocation6]
    $region13: #{tpu_custom_call.1} parent=1 // pred_fallthru
      _
    // Predicated region
    $region14: #{tpu_custom_call.1} parent=1 // pred_check
      _
    $region15: #{tpu_custom_call.1} parent=1 // pred_check_branch
      %46 = sbr.rel (0) target = $region17
    $region16: #{tpu_custom_call.1} parent=1 // pred_region
      %47 = dma.done [#allocation3], 1792
    $region17: #{tpu_custom_call.1} parent=1 // pred_fallthru
      _
    // Predicated region
    $region18: #{tpu_custom_call.1} parent=1 // pred_check
      _
    $region19: #{tpu_custom_call.1} parent=1 // pred_check_branch
      %49 = sbr.rel (0) target = $region21
    $region20: #{tpu_custom_call.1} parent=1 // pred_region
      %50 = dma.done [#allocation6], 43904
    $region21: #{tpu_custom_call.1} parent=1 // pred_fallthru
      _
    // Predicated region
    $region22: #{tpu_custom_call.1} parent=1 // pred_check
      _
    $region23: #{tpu_custom_call.1} parent=1 // pred_check_branch
      %52 = sbr.rel (0) target = $region25
    $region24: #{tpu_custom_call.1} parent=1 // pred_region
      %53 = dma.done [#allocation6], 112
    $region25: #{tpu_custom_call.1} parent=1 // pred_fallthru
      _
    %v55 = vld [vmem:[#allocation2] sm:$0xff]
    %v56 = vld [vmem:[#allocation2 + $0x8] sm:$0x3f]
    %v57 = vld [vmem:[#allocation2 + $0xe] sm:$0xff]
    %v58 = vld [vmem:[#allocation2 + $0x16] sm:$0x3f]
    %v59 = vld [vmem:[#allocation2 + $0x1c] sm:$0xff]
    %v60 = vld [vmem:[#allocation2 + $0x24] sm:$0x3f]
    %v61 = vld [vmem:[#allocation2 + $0x2a] sm:$0xff]
    %v62 = vld [vmem:[#allocation2 + $0x32] sm:$0x3f]
    %v63 = vld [vmem:[#allocation2 + $0x38] sm:$0xff]
    %v64 = vld [vmem:[#allocation2 + $0x40] sm:$0x3f]
    %v65 = vld [vmem:[#allocation2 + $0x46] sm:$0xff]
    %v66 = vld [vmem:[#allocation2 + $0x4e] sm:$0x3f]
    %v67 = vld [vmem:[#allocation2 + $0x54] sm:$0xff]
    %v68 = vld [vmem:[#allocation2 + $0x5c] sm:$0x3f]
    %v69 = vld [vmem:[#allocation2 + $0x62] sm:$0xff]
    %v70 = vld [vmem:[#allocation2 + $0x6a] sm:$0x3f]
    %v87 = vcombine.low %v55, %v57
    %v88 = vcombine.high %v55, %v57
    %v89 = vcombine.low %v59, %v61
    %v90 = vcombine.high %v59, %v61
    %v92 = vunpack.c.l.s4 1983009808
    %v93 = vunpack.c.0.s8 %v92
    %v94 = vlaneseq
    %v95 = vshrl.u32 %v94, 7
    %v96 = vsub.s32 %v93, %v95
    %v97 = vrot.slane %v87, %v96
    %v99 = vunpack.c.l.s4 1983009808
    %v100 = vunpack.c.0.s8 %v99
    %v101 = vlaneseq
    %v102 = vshrl.u32 %v101, 7
    %v103 = vsub.s32 %v100, %v102
    %v104 = vrot.slane %v88, %v103
    %v106 = vunpack.c.l.s4 1983009808
    %v107 = vunpack.c.0.s8 %v106
    %v108 = vlaneseq
    %v109 = vshrl.u32 %v108, 7
    %v110 = vsub.s32 %v107, %v109
    %v111 = vrot.slane %v89, %v110
    %v113 = vunpack.c.l.s4 1983009808
    %v114 = vunpack.c.0.s8 %v113
    %v115 = vlaneseq
    %v116 = vshrl.u32 %v115, 7
    %v117 = vsub.s32 %v114, %v116
    %v118 = vrot.slane %v90, %v117
    %v119 = vcombine.low %v97, %v111
    %v120 = vcombine.high %v97, %v111
    %v121 = vcombine.low %v104, %v118
    %v122 = vcombine.high %v104, %v118
    %v123 = vcombine.low %v56, %v58
    %v124 = vcombine.high %v56, %v58
    %v125 = vcombine.low %v60, %v62
    %v126 = vcombine.high %v60, %v62
    %v128 = vunpack.c.l.s4 1983009808
    %v129 = vunpack.c.0.s8 %v128
    %v130 = vlaneseq
    %v131 = vshrl.u32 %v130, 7
    %v132 = vsub.s32 %v129, %v131
    %v133 = vrot.slane %v123, %v132
    %v135 = vunpack.c.l.s4 1983009808
    %v136 = vunpack.c.0.s8 %v135
    %v137 = vlaneseq
    %v138 = vshrl.u32 %v137, 7
    %v139 = vsub.s32 %v136, %v138
    %v140 = vrot.slane %v124, %v139
    %v142 = vunpack.c.l.s4 1983009808
    %v143 = vunpack.c.0.s8 %v142
    %v144 = vlaneseq
    %v145 = vshrl.u32 %v144, 7
    %v146 = vsub.s32 %v143, %v145
    %v147 = vrot.slane %v125, %v146
    %v149 = vunpack.c.l.s4 1983009808
    %v150 = vunpack.c.0.s8 %v149
    %v151 = vlaneseq
    %v152 = vshrl.u32 %v151, 7
    %v153 = vsub.s32 %v150, %v152
    %v154 = vrot.slane %v126, %v153
    %v155 = vcombine.low %v133, %v147
    %v156 = vcombine.high %v133, %v147
    %v157 = vcombine.low %v140, %v154
    %v158 = vcombine.low %v63, %v65
    %v159 = vcombine.high %v63, %v65
    %v160 = vcombine.low %v67, %v69
    %v161 = vcombine.high %v67, %v69
    %v163 = vunpack.c.l.s4 1983009808
    %v164 = vunpack.c.0.s8 %v163
    %v165 = vlaneseq
    %v166 = vshrl.u32 %v165, 7
    %v167 = vsub.s32 %v164, %v166
    %v168 = vrot.slane %v158, %v167
    %v170 = vunpack.c.l.s4 1983009808
    %v171 = vunpack.c.0.s8 %v170
    %v172 = vlaneseq
    %v173 = vshrl.u32 %v172, 7
    %v174 = vsub.s32 %v171, %v173
    %v175 = vrot.slane %v159, %v174
    %v177 = vunpack.c.l.s4 1983009808
    %v178 = vunpack.c.0.s8 %v177
    %v179 = vlaneseq
    %v180 = vshrl.u32 %v179, 7
    %v181 = vsub.s32 %v178, %v180
    %v182 = vrot.slane %v160, %v181
    %v184 = vunpack.c.l.s4 1983009808
    %v185 = vunpack.c.0.s8 %v184
    %v186 = vlaneseq
    %v187 = vshrl.u32 %v186, 7
    %v188 = vsub.s32 %v185, %v187
    %v189 = vrot.slane %v161, %v188
    %v190 = vcombine.low %v168, %v182
    %v191 = vcombine.high %v168, %v182
    %v192 = vcombine.low %v175, %v189
    %v193 = vcombine.high %v175, %v189
    %v194 = vcombine.low %v64, %v66
    %v195 = vcombine.high %v64, %v66
    %v196 = vcombine.low %v68, %v70
    %v197 = vcombine.high %v68, %v70
    %v199 = vunpack.c.l.s4 1983009808
    %v200 = vunpack.c.0.s8 %v199
    %v201 = vlaneseq
    %v202 = vshrl.u32 %v201, 7
    %v203 = vsub.s32 %v200, %v202
    %v204 = vrot.slane %v194, %v203
    %v206 = vunpack.c.l.s4 1983009808
    %v207 = vunpack.c.0.s8 %v206
    %v208 = vlaneseq
    %v209 = vshrl.u32 %v208, 7
    %v210 = vsub.s32 %v207, %v209
    %v211 = vrot.slane %v195, %v210
    %v213 = vunpack.c.l.s4 1983009808
    %v214 = vunpack.c.0.s8 %v213
    %v215 = vlaneseq
    %v216 = vshrl.u32 %v215, 7
    %v217 = vsub.s32 %v214, %v216
    %v218 = vrot.slane %v196, %v217
    %v220 = vunpack.c.l.s4 1983009808
    %v221 = vunpack.c.0.s8 %v220
    %v222 = vlaneseq
    %v223 = vshrl.u32 %v222, 7
    %v224 = vsub.s32 %v221, %v223
    %v225 = vrot.slane %v197, %v224
    %v226 = vcombine.low %v204, %v218
    %v227 = vcombine.high %v204, %v218
    %v228 = vcombine.low %v211, %v225
    %v243 = vpack.c.bf16 %v190, %v119
    %v244 = vpack.c.bf16 %v191, %v120
    %v245 = vpack.c.bf16 %v192, %v121
    %v246 = vpack.c.bf16 %v193, %v122
    %v247 = vpack.c.bf16 %v226, %v155
    %v248 = vpack.c.bf16 %v227, %v156
    %v249 = vpack.c.bf16 %v228, %v157
    %v250 = vld [vmem:[#allocation5] sm:$0xff]
    %v251 = vld [vmem:[#allocation5 + $0x8] sm:$0xff]
    %v252 = vld [vmem:[#allocation5 + $0x10] sm:$0xff]
    %v253 = vld [vmem:[#allocation5 + $0x18] sm:$0xf]
    %v254 = vld [vmem:[#allocation5 + $0x1c] sm:$0xff]
    %v255 = vld [vmem:[#allocation5 + $0x24] sm:$0xff]
    %v256 = vld [vmem:[#allocation5 + $0x2c] sm:$0xff]
    %v257 = vld [vmem:[#allocation5 + $0x34] sm:$0xf]
    %v258 = vld [vmem:[#allocation5 + $0x38] sm:$0xff]
    %v259 = vld [vmem:[#allocation5 + $0x40] sm:$0xff]
    %v260 = vld [vmem:[#allocation5 + $0x48] sm:$0xff]
    %v261 = vld [vmem:[#allocation5 + $0x50] sm:$0xf]
    %v262 = vld [vmem:[#allocation5 + $0x54] sm:$0xff]
    %v263 = vld [vmem:[#allocation5 + $0x5c] sm:$0xff]
    %v264 = vld [vmem:[#allocation5 + $0x64] sm:$0xff]
    %v265 = vld [vmem:[#allocation5 + $0x6c] sm:$0xf]
    %v266 = vld [vmem:[#allocation5 + $0x70] sm:$0xff]
    %v267 = vld [vmem:[#allocation5 + $0x78] sm:$0xff]
    %v268 = vld [vmem:[#allocation5 + $0x80] sm:$0xff]
    %v269 = vld [vmem:[#allocation5 + $0x88] sm:$0xf]
    %v270 = vld [vmem:[#allocation5 + $0x8c] sm:$0xff]
    %v271 = vld [vmem:[#allocation5 + $0x94] sm:$0xff]
    %v272 = vld [vmem:[#allocation5 + $0x9c] sm:$0xff]
    %v273 = vld [vmem:[#allocation5 + $0xa4] sm:$0xf]
    %v274 = vld [vmem:[#allocation5 + $0xa8] sm:$0xff]
    %v275 = vld [vmem:[#allocation5 + $0xb0] sm:$0xff]
    %v276 = vld [vmem:[#allocation5 + $0xb8] sm:$0xff]
    %v277 = vld [vmem:[#allocation5 + $0xc0] sm:$0xf]
    %v278 = vld [vmem:[#allocation5 + $0xc4] sm:$0xff]
    %v279 = vld [vmem:[#allocation5 + $0xcc] sm:$0xff]
    %v280 = vld [vmem:[#allocation5 + $0xd4] sm:$0xff]
    %v281 = vld [vmem:[#allocation5 + $0xdc] sm:$0xf]
    %v282 = vld [vmem:[#allocation5 + $0xe0] sm:$0xff]
    %v283 = vld [vmem:[#allocation5 + $0xe8] sm:$0xff]
    %v284 = vld [vmem:[#allocation5 + $0xf0] sm:$0xff]
    %v285 = vld [vmem:[#allocation5 + $0xf8] sm:$0xf]
    %v286 = vld [vmem:[#allocation5 + $0xfc] sm:$0xff]
    %v287 = vld [vmem:[#allocation5 + $0x104] sm:$0xff]
    %v288 = vld [vmem:[#allocation5 + $0x10c] sm:$0xff]
    %v289 = vld [vmem:[#allocation5 + $0x114] sm:$0xf]
    %v290 = vld [vmem:[#allocation5 + $0x118] sm:$0xff]
    %v291 = vld [vmem:[#allocation5 + $0x120] sm:$0xff]
    %v292 = vld [vmem:[#allocation5 + $0x128] sm:$0xff]
    %v293 = vld [vmem:[#allocation5 + $0x130] sm:$0xf]
    %v294 = vld [vmem:[#allocation5 + $0x134] sm:$0xff]
    %v295 = vld [vmem:[#allocation5 + $0x13c] sm:$0xff]
    %v296 = vld [vmem:[#allocation5 + $0x144] sm:$0xff]
    %v297 = vld [vmem:[#allocation5 + $0x14c] sm:$0xf]
    %v298 = vld [vmem:[#allocation5 + $0x150] sm:$0xff]
    %v299 = vld [vmem:[#allocation5 + $0x158] sm:$0xff]
    %v300 = vld [vmem:[#allocation5 + $0x160] sm:$0xff]
    %v301 = vld [vmem:[#allocation5 + $0x168] sm:$0xf]
    %v302 = vld [vmem:[#allocation5 + $0x16c] sm:$0xff]
    %v303 = vld [vmem:[#allocation5 + $0x174] sm:$0xff]
    %v304 = vld [vmem:[#allocation5 + $0x17c] sm:$0xff]
    %v305 = vld [vmem:[#allocation5 + $0x184] sm:$0xf]
    %v306 = vld [vmem:[#allocation5 + $0x188] sm:$0xff]
    %v307 = vld [vmem:[#allocation5 + $0x190] sm:$0xff]
    %v308 = vld [vmem:[#allocation5 + $0x198] sm:$0xff]
    %v309 = vld [vmem:[#allocation5 + $0x1a0] sm:$0xf]
    %v310 = vld [vmem:[#allocation5 + $0x1a4] sm:$0xff]
    %v311 = vld [vmem:[#allocation5 + $0x1ac] sm:$0xff]
    %v312 = vld [vmem:[#allocation5 + $0x1b4] sm:$0xff]
    %v313 = vld [vmem:[#allocation5 + $0x1bc] sm:$0xf]
    %v314 = vld [vmem:[#allocation5 + $0x1c0] sm:$0xff]
    %v315 = vld [vmem:[#allocation5 + $0x1c8] sm:$0xff]
    %v316 = vld [vmem:[#allocation5 + $0x1d0] sm:$0xff]
    %v317 = vld [vmem:[#allocation5 + $0x1d8] sm:$0xf]
    %v318 = vld [vmem:[#allocation5 + $0x1dc] sm:$0xff]
    %v319 = vld [vmem:[#allocation5 + $0x1e4] sm:$0xff]
    %v320 = vld [vmem:[#allocation5 + $0x1ec] sm:$0xff]
    %v321 = vld [vmem:[#allocation5 + $0x1f4] sm:$0xf]
    %v322 = vld [vmem:[#allocation5 + $0x1f8] sm:$0xff]
    %v323 = vld [vmem:[#allocation5 + $0x200] sm:$0xff]
    %v324 = vld [vmem:[#allocation5 + $0x208] sm:$0xff]
    %v325 = vld [vmem:[#allocation5 + $0x210] sm:$0xf]
    %v326 = vld [vmem:[#allocation5 + $0x214] sm:$0xff]
    %v327 = vld [vmem:[#allocation5 + $0x21c] sm:$0xff]
    %v328 = vld [vmem:[#allocation5 + $0x224] sm:$0xff]
    %v329 = vld [vmem:[#allocation5 + $0x22c] sm:$0xf]
    %v330 = vld [vmem:[#allocation5 + $0x230] sm:$0xff]
    %v331 = vld [vmem:[#allocation5 + $0x238] sm:$0xff]
    %v332 = vld [vmem:[#allocation5 + $0x240] sm:$0xff]
    %v333 = vld [vmem:[#allocation5 + $0x248] sm:$0xf]
    %v334 = vld [vmem:[#allocation5 + $0x24c] sm:$0xff]
    %v335 = vld [vmem:[#allocation5 + $0x254] sm:$0xff]
    %v336 = vld [vmem:[#allocation5 + $0x25c] sm:$0xff]
    %v337 = vld [vmem:[#allocation5 + $0x264] sm:$0xf]
    %v338 = vld [vmem:[#allocation5 + $0x268] sm:$0xff]
    %v339 = vld [vmem:[#allocation5 + $0x270] sm:$0xff]
    %v340 = vld [vmem:[#allocation5 + $0x278] sm:$0xff]
    %v341 = vld [vmem:[#allocation5 + $0x280] sm:$0xf]
    %v342 = vld [vmem:[#allocation5 + $0x284] sm:$0xff]
    %v343 = vld [vmem:[#allocation5 + $0x28c] sm:$0xff]
    %v344 = vld [vmem:[#allocation5 + $0x294] sm:$0xff]
    %v345 = vld [vmem:[#allocation5 + $0x29c] sm:$0xf]
    %v346 = vld [vmem:[#allocation5 + $0x2a0] sm:$0xff]
    %v347 = vld [vmem:[#allocation5 + $0x2a8] sm:$0xff]
    %v348 = vld [vmem:[#allocation5 + $0x2b0] sm:$0xff]
    %v349 = vld [vmem:[#allocation5 + $0x2b8] sm:$0xf]
    %v350 = vld [vmem:[#allocation5 + $0x2bc] sm:$0xff]
    %v351 = vld [vmem:[#allocation5 + $0x2c4] sm:$0xff]
    %v352 = vld [vmem:[#allocation5 + $0x2cc] sm:$0xff]
    %v353 = vld [vmem:[#allocation5 + $0x2d4] sm:$0xf]
    %v354 = vld [vmem:[#allocation5 + $0x2d8] sm:$0xff]
    %v355 = vld [vmem:[#allocation5 + $0x2e0] sm:$0xff]
    %v356 = vld [vmem:[#allocation5 + $0x2e8] sm:$0xff]
    %v357 = vld [vmem:[#allocation5 + $0x2f0] sm:$0xf]
    %v358 = vld [vmem:[#allocation5 + $0x2f4] sm:$0xff]
    %v359 = vld [vmem:[#allocation5 + $0x2fc] sm:$0xff]
    %v360 = vld [vmem:[#allocation5 + $0x304] sm:$0xff]
    %v361 = vld [vmem:[#allocation5 + $0x30c] sm:$0xf]
    %v362 = vld [vmem:[#allocation5 + $0x310] sm:$0xff]
    %v363 = vld [vmem:[#allocation5 + $0x318] sm:$0xff]
    %v364 = vld [vmem:[#allocation5 + $0x320] sm:$0xff]
    %v365 = vld [vmem:[#allocation5 + $0x328] sm:$0xf]
    %v366 = vld [vmem:[#allocation5 + $0x32c] sm:$0xff]
    %v367 = vld [vmem:[#allocation5 + $0x334] sm:$0xff]
    %v368 = vld [vmem:[#allocation5 + $0x33c] sm:$0xff]
    %v369 = vld [vmem:[#allocation5 + $0x344] sm:$0xf]
    %v370 = vld [vmem:[#allocation5 + $0x348] sm:$0xff]
    %v371 = vld [vmem:[#allocation5 + $0x350] sm:$0xff]
    %v372 = vld [vmem:[#allocation5 + $0x358] sm:$0xff]
    %v373 = vld [vmem:[#allocation5 + $0x360] sm:$0xf]
    %v374 = vld [vmem:[#allocation5 + $0x364] sm:$0xff]
    %v375 = vld [vmem:[#allocation5 + $0x36c] sm:$0xff]
    %v376 = vld [vmem:[#allocation5 + $0x374] sm:$0xff]
    %v377 = vld [vmem:[#allocation5 + $0x37c] sm:$0xf]
    %v378 = vld [vmem:[#allocation5 + $0x380] sm:$0xff]
    %v379 = vld [vmem:[#allocation5 + $0x388] sm:$0xff]
    %v380 = vld [vmem:[#allocation5 + $0x390] sm:$0xff]
    %v381 = vld [vmem:[#allocation5 + $0x398] sm:$0xf]
    %v382 = vld [vmem:[#allocation5 + $0x39c] sm:$0xff]
    %v383 = vld [vmem:[#allocation5 + $0x3a4] sm:$0xff]
    %v384 = vld [vmem:[#allocation5 + $0x3ac] sm:$0xff]
    %v385 = vld [vmem:[#allocation5 + $0x3b4] sm:$0xf]
    %v386 = vld [vmem:[#allocation5 + $0x3b8] sm:$0xff]
    %v387 = vld [vmem:[#allocation5 + $0x3c0] sm:$0xff]
    %v388 = vld [vmem:[#allocation5 + $0x3c8] sm:$0xff]
    %v389 = vld [vmem:[#allocation5 + $0x3d0] sm:$0xf]
    %v390 = vld [vmem:[#allocation5 + $0x3d4] sm:$0xff]
    %v391 = vld [vmem:[#allocation5 + $0x3dc] sm:$0xff]
    %v392 = vld [vmem:[#allocation5 + $0x3e4] sm:$0xff]
    %v393 = vld [vmem:[#allocation5 + $0x3ec] sm:$0xf]
    %v394 = vld [vmem:[#allocation5 + $0x3f0] sm:$0xff]
    %v395 = vld [vmem:[#allocation5 + $0x3f8] sm:$0xff]
    %v396 = vld [vmem:[#allocation5 + $0x400] sm:$0xff]
    %v397 = vld [vmem:[#allocation5 + $0x408] sm:$0xf]
    %v398 = vld [vmem:[#allocation5 + $0x40c] sm:$0xff]
    %v399 = vld [vmem:[#allocation5 + $0x414] sm:$0xff]
    %v400 = vld [vmem:[#allocation5 + $0x41c] sm:$0xff]
    %v401 = vld [vmem:[#allocation5 + $0x424] sm:$0xf]
    %v402 = vld [vmem:[#allocation5 + $0x428] sm:$0xff]
    %v403 = vld [vmem:[#allocation5 + $0x430] sm:$0xff]
    %v404 = vld [vmem:[#allocation5 + $0x438] sm:$0xff]
    %v405 = vld [vmem:[#allocation5 + $0x440] sm:$0xf]
    %v406 = vld [vmem:[#allocation5 + $0x444] sm:$0xff]
    %v407 = vld [vmem:[#allocation5 + $0x44c] sm:$0xff]
    %v408 = vld [vmem:[#allocation5 + $0x454] sm:$0xff]
    %v409 = vld [vmem:[#allocation5 + $0x45c] sm:$0xf]
    %v410 = vld [vmem:[#allocation5 + $0x460] sm:$0xff]
    %v411 = vld [vmem:[#allocation5 + $0x468] sm:$0xff]
    %v412 = vld [vmem:[#allocation5 + $0x470] sm:$0xff]
    %v413 = vld [vmem:[#allocation5 + $0x478] sm:$0xf]
    %v414 = vld [vmem:[#allocation5 + $0x47c] sm:$0xff]
    %v415 = vld [vmem:[#allocation5 + $0x484] sm:$0xff]
    %v416 = vld [vmem:[#allocation5 + $0x48c] sm:$0xff]
    %v417 = vld [vmem:[#allocation5 + $0x494] sm:$0xf]
    %v418 = vld [vmem:[#allocation5 + $0x498] sm:$0xff]
    %v419 = vld [vmem:[#allocation5 + $0x4a0] sm:$0xff]
    %v420 = vld [vmem:[#allocation5 + $0x4a8] sm:$0xff]
    %v421 = vld [vmem:[#allocation5 + $0x4b0] sm:$0xf]
    %v422 = vld [vmem:[#allocation5 + $0x4b4] sm:$0xff]
    %v423 = vld [vmem:[#allocation5 + $0x4bc] sm:$0xff]
    %v424 = vld [vmem:[#allocation5 + $0x4c4] sm:$0xff]
    %v425 = vld [vmem:[#allocation5 + $0x4cc] sm:$0xf]
    %v426 = vld [vmem:[#allocation5 + $0x4d0] sm:$0xff]
    %v427 = vld [vmem:[#allocation5 + $0x4d8] sm:$0xff]
    %v428 = vld [vmem:[#allocation5 + $0x4e0] sm:$0xff]
    %v429 = vld [vmem:[#allocation5 + $0x4e8] sm:$0xf]
    %v430 = vld [vmem:[#allocation5 + $0x4ec] sm:$0xff]
    %v431 = vld [vmem:[#allocation5 + $0x4f4] sm:$0xff]
    %v432 = vld [vmem:[#allocation5 + $0x4fc] sm:$0xff]
    %v433 = vld [vmem:[#allocation5 + $0x504] sm:$0xf]
    %v434 = vld [vmem:[#allocation5 + $0x508] sm:$0xff]
    %v435 = vld [vmem:[#allocation5 + $0x510] sm:$0xff]
    %v436 = vld [vmem:[#allocation5 + $0x518] sm:$0xff]
    %v437 = vld [vmem:[#allocation5 + $0x520] sm:$0xf]
    %v438 = vld [vmem:[#allocation5 + $0x524] sm:$0xff]
    %v439 = vld [vmem:[#allocation5 + $0x52c] sm:$0xff]
    %v440 = vld [vmem:[#allocation5 + $0x534] sm:$0xff]
    %v441 = vld [vmem:[#allocation5 + $0x53c] sm:$0xf]
    %v442 = vld [vmem:[#allocation5 + $0x540] sm:$0xff]
    %v443 = vld [vmem:[#allocation5 + $0x548] sm:$0xff]
    %v444 = vld [vmem:[#allocation5 + $0x550] sm:$0xff]
    %v445 = vld [vmem:[#allocation5 + $0x558] sm:$0xf]
    %v446 = vld [vmem:[#allocation5 + $0x55c] sm:$0xff]
    %v447 = vld [vmem:[#allocation5 + $0x564] sm:$0xff]
    %v448 = vld [vmem:[#allocation5 + $0x56c] sm:$0xff]
    %v449 = vld [vmem:[#allocation5 + $0x574] sm:$0xf]
    %v450 = vld [vmem:[#allocation5 + $0x578] sm:$0xff]
    %v451 = vld [vmem:[#allocation5 + $0x580] sm:$0xff]
    %v452 = vld [vmem:[#allocation5 + $0x588] sm:$0xff]
    %v453 = vld [vmem:[#allocation5 + $0x590] sm:$0xf]
    %v454 = vld [vmem:[#allocation5 + $0x594] sm:$0xff]
    %v455 = vld [vmem:[#allocation5 + $0x59c] sm:$0xff]
    %v456 = vld [vmem:[#allocation5 + $0x5a4] sm:$0xff]
    %v457 = vld [vmem:[#allocation5 + $0x5ac] sm:$0xf]
    %v458 = vld [vmem:[#allocation5 + $0x5b0] sm:$0xff]
    %v459 = vld [vmem:[#allocation5 + $0x5b8] sm:$0xff]
    %v460 = vld [vmem:[#allocation5 + $0x5c0] sm:$0xff]
    %v461 = vld [vmem:[#allocation5 + $0x5c8] sm:$0xf]
    %v462 = vld [vmem:[#allocation5 + $0x5cc] sm:$0xff]
    %v463 = vld [vmem:[#allocation5 + $0x5d4] sm:$0xff]
    %v464 = vld [vmem:[#allocation5 + $0x5dc] sm:$0xff]
    %v465 = vld [vmem:[#allocation5 + $0x5e4] sm:$0xf]
    %v466 = vld [vmem:[#allocation5 + $0x5e8] sm:$0xff]
    %v467 = vld [vmem:[#allocation5 + $0x5f0] sm:$0xff]
    %v468 = vld [vmem:[#allocation5 + $0x5f8] sm:$0xff]
    %v469 = vld [vmem:[#allocation5 + $0x600] sm:$0xf]
    %v470 = vld [vmem:[#allocation5 + $0x604] sm:$0xff]
    %v471 = vld [vmem:[#allocation5 + $0x60c] sm:$0xff]
    %v472 = vld [vmem:[#allocation5 + $0x614] sm:$0xff]
    %v473 = vld [vmem:[#allocation5 + $0x61c] sm:$0xf]
    %v474 = vld [vmem:[#allocation5 + $0x620] sm:$0xff]
    %v475 = vld [vmem:[#allocation5 + $0x628] sm:$0xff]
    %v476 = vld [vmem:[#allocation5 + $0x630] sm:$0xff]
    %v477 = vld [vmem:[#allocation5 + $0x638] sm:$0xf]
    %v478 = vld [vmem:[#allocation5 + $0x63c] sm:$0xff]
    %v479 = vld [vmem:[#allocation5 + $0x644] sm:$0xff]
    %v480 = vld [vmem:[#allocation5 + $0x64c] sm:$0xff]
    %v481 = vld [vmem:[#allocation5 + $0x654] sm:$0xf]
    %v482 = vld [vmem:[#allocation5 + $0x658] sm:$0xff]
    %v483 = vld [vmem:[#allocation5 + $0x660] sm:$0xff]
    %v484 = vld [vmem:[#allocation5 + $0x668] sm:$0xff]
    %v485 = vld [vmem:[#allocation5 + $0x670] sm:$0xf]
    %v486 = vld [vmem:[#allocation5 + $0x674] sm:$0xff]
    %v487 = vld [vmem:[#allocation5 + $0x67c] sm:$0xff]
    %v488 = vld [vmem:[#allocation5 + $0x684] sm:$0xff]
    %v489 = vld [vmem:[#allocation5 + $0x68c] sm:$0xf]
    %v490 = vld [vmem:[#allocation5 + $0x690] sm:$0xff]
    %v491 = vld [vmem:[#allocation5 + $0x698] sm:$0xff]
    %v492 = vld [vmem:[#allocation5 + $0x6a0] sm:$0xff]
    %v493 = vld [vmem:[#allocation5 + $0x6a8] sm:$0xf]
    %v494 = vld [vmem:[#allocation5 + $0x6ac] sm:$0xff]
    %v495 = vld [vmem:[#allocation5 + $0x6b4] sm:$0xff]
    %v496 = vld [vmem:[#allocation5 + $0x6bc] sm:$0xff]
    %v497 = vld [vmem:[#allocation5 + $0x6c4] sm:$0xf]
    %v498 = vld [vmem:[#allocation5 + $0x6c8] sm:$0xff]
    %v499 = vld [vmem:[#allocation5 + $0x6d0] sm:$0xff]
    %v500 = vld [vmem:[#allocation5 + $0x6d8] sm:$0xff]
    %v501 = vld [vmem:[#allocation5 + $0x6e0] sm:$0xf]
    %v502 = vld [vmem:[#allocation5 + $0x6e4] sm:$0xff]
    %v503 = vld [vmem:[#allocation5 + $0x6ec] sm:$0xff]
    %v504 = vld [vmem:[#allocation5 + $0x6f4] sm:$0xff]
    %v505 = vld [vmem:[#allocation5 + $0x6fc] sm:$0xf]
    %v506 = vld [vmem:[#allocation5 + $0x700] sm:$0xff]
    %v507 = vld [vmem:[#allocation5 + $0x708] sm:$0xff]
    %v508 = vld [vmem:[#allocation5 + $0x710] sm:$0xff]
    %v509 = vld [vmem:[#allocation5 + $0x718] sm:$0xf]
    %v510 = vld [vmem:[#allocation5 + $0x71c] sm:$0xff]
    %v511 = vld [vmem:[#allocation5 + $0x724] sm:$0xff]
    %v512 = vld [vmem:[#allocation5 + $0x72c] sm:$0xff]
    %v513 = vld [vmem:[#allocation5 + $0x734] sm:$0xf]
    %v514 = vld [vmem:[#allocation5 + $0x738] sm:$0xff]
    %v515 = vld [vmem:[#allocation5 + $0x740] sm:$0xff]
    %v516 = vld [vmem:[#allocation5 + $0x748] sm:$0xff]
    %v517 = vld [vmem:[#allocation5 + $0x750] sm:$0xf]
    %v518 = vld [vmem:[#allocation5 + $0x754] sm:$0xff]
    %v519 = vld [vmem:[#allocation5 + $0x75c] sm:$0xff]
    %v520 = vld [vmem:[#allocation5 + $0x764] sm:$0xff]
    %v521 = vld [vmem:[#allocation5 + $0x76c] sm:$0xf]
    %v522 = vld [vmem:[#allocation5 + $0x770] sm:$0xff]
    %v523 = vld [vmem:[#allocation5 + $0x778] sm:$0xff]
    %v524 = vld [vmem:[#allocation5 + $0x780] sm:$0xff]
    %v525 = vld [vmem:[#allocation5 + $0x788] sm:$0xf]
    %v526 = vld [vmem:[#allocation5 + $0x78c] sm:$0xff]
    %v527 = vld [vmem:[#allocation5 + $0x794] sm:$0xff]
    %v528 = vld [vmem:[#allocation5 + $0x79c] sm:$0xff]
    %v529 = vld [vmem:[#allocation5 + $0x7a4] sm:$0xf]
    %v530 = vld [vmem:[#allocation5 + $0x7a8] sm:$0xff]
    %v531 = vld [vmem:[#allocation5 + $0x7b0] sm:$0xff]
    %v532 = vld [vmem:[#allocation5 + $0x7b8] sm:$0xff]
    %v533 = vld [vmem:[#allocation5 + $0x7c0] sm:$0xf]
    %v534 = vld [vmem:[#allocation5 + $0x7c4] sm:$0xff]
    %v535 = vld [vmem:[#allocation5 + $0x7cc] sm:$0xff]
    %v536 = vld [vmem:[#allocation5 + $0x7d4] sm:$0xff]
    %v537 = vld [vmem:[#allocation5 + $0x7dc] sm:$0xf]
    %v538 = vld [vmem:[#allocation5 + $0x7e0] sm:$0xff]
    %v539 = vld [vmem:[#allocation5 + $0x7e8] sm:$0xff]
    %v540 = vld [vmem:[#allocation5 + $0x7f0] sm:$0xff]
    %v541 = vld [vmem:[#allocation5 + $0x7f8] sm:$0xf]
    %v542 = vld [vmem:[#allocation5 + $0x7fc] sm:$0xff]
    %v543 = vld [vmem:[#allocation5 + $0x804] sm:$0xff]
    %v544 = vld [vmem:[#allocation5 + $0x80c] sm:$0xff]
    %v545 = vld [vmem:[#allocation5 + $0x814] sm:$0xf]
    %v546 = vld [vmem:[#allocation5 + $0x818] sm:$0xff]
    %v547 = vld [vmem:[#allocation5 + $0x820] sm:$0xff]
    %v548 = vld [vmem:[#allocation5 + $0x828] sm:$0xff]
    %v549 = vld [vmem:[#allocation5 + $0x830] sm:$0xf]
    %v550 = vld [vmem:[#allocation5 + $0x834] sm:$0xff]
    %v551 = vld [vmem:[#allocation5 + $0x83c] sm:$0xff]
    %v552 = vld [vmem:[#allocation5 + $0x844] sm:$0xff]
    %v553 = vld [vmem:[#allocation5 + $0x84c] sm:$0xf]
    %v554 = vld [vmem:[#allocation5 + $0x850] sm:$0xff]
    %v555 = vld [vmem:[#allocation5 + $0x858] sm:$0xff]
    %v556 = vld [vmem:[#allocation5 + $0x860] sm:$0xff]
    %v557 = vld [vmem:[#allocation5 + $0x868] sm:$0xf]
    %v558 = vld [vmem:[#allocation5 + $0x86c] sm:$0xff]
    %v559 = vld [vmem:[#allocation5 + $0x874] sm:$0xff]
    %v560 = vld [vmem:[#allocation5 + $0x87c] sm:$0xff]
    %v561 = vld [vmem:[#allocation5 + $0x884] sm:$0xf]
    %v562 = vld [vmem:[#allocation5 + $0x888] sm:$0xff]
    %v563 = vld [vmem:[#allocation5 + $0x890] sm:$0xff]
    %v564 = vld [vmem:[#allocation5 + $0x898] sm:$0xff]
    %v565 = vld [vmem:[#allocation5 + $0x8a0] sm:$0xf]
    %v566 = vld [vmem:[#allocation5 + $0x8a4] sm:$0xff]
    %v567 = vld [vmem:[#allocation5 + $0x8ac] sm:$0xff]
    %v568 = vld [vmem:[#allocation5 + $0x8b4] sm:$0xff]
    %v569 = vld [vmem:[#allocation5 + $0x8bc] sm:$0xf]
    %v570 = vld [vmem:[#allocation5 + $0x8c0] sm:$0xff]
    %v571 = vld [vmem:[#allocation5 + $0x8c8] sm:$0xff]
    %v572 = vld [vmem:[#allocation5 + $0x8d0] sm:$0xff]
    %v573 = vld [vmem:[#allocation5 + $0x8d8] sm:$0xf]
    %v574 = vld [vmem:[#allocation5 + $0x8dc] sm:$0xff]
    %v575 = vld [vmem:[#allocation5 + $0x8e4] sm:$0xff]
    %v576 = vld [vmem:[#allocation5 + $0x8ec] sm:$0xff]
    %v577 = vld [vmem:[#allocation5 + $0x8f4] sm:$0xf]
    %v578 = vld [vmem:[#allocation5 + $0x8f8] sm:$0xff]
    %v579 = vld [vmem:[#allocation5 + $0x900] sm:$0xff]
    %v580 = vld [vmem:[#allocation5 + $0x908] sm:$0xff]
    %v581 = vld [vmem:[#allocation5 + $0x910] sm:$0xf]
    %v582 = vld [vmem:[#allocation5 + $0x914] sm:$0xff]
    %v583 = vld [vmem:[#allocation5 + $0x91c] sm:$0xff]
    %v584 = vld [vmem:[#allocation5 + $0x924] sm:$0xff]
    %v585 = vld [vmem:[#allocation5 + $0x92c] sm:$0xf]
    %v586 = vld [vmem:[#allocation5 + $0x930] sm:$0xff]
    %v587 = vld [vmem:[#allocation5 + $0x938] sm:$0xff]
    %v588 = vld [vmem:[#allocation5 + $0x940] sm:$0xff]
    %v589 = vld [vmem:[#allocation5 + $0x948] sm:$0xf]
    %v590 = vld [vmem:[#allocation5 + $0x94c] sm:$0xff]
    %v591 = vld [vmem:[#allocation5 + $0x954] sm:$0xff]
    %v592 = vld [vmem:[#allocation5 + $0x95c] sm:$0xff]
    %v593 = vld [vmem:[#allocation5 + $0x964] sm:$0xf]
    %v594 = vld [vmem:[#allocation5 + $0x968] sm:$0xff]
    %v595 = vld [vmem:[#allocation5 + $0x970] sm:$0xff]
    %v596 = vld [vmem:[#allocation5 + $0x978] sm:$0xff]
    %v597 = vld [vmem:[#allocation5 + $0x980] sm:$0xf]
    %v598 = vld [vmem:[#allocation5 + $0x984] sm:$0xff]
    %v599 = vld [vmem:[#allocation5 + $0x98c] sm:$0xff]
    %v600 = vld [vmem:[#allocation5 + $0x994] sm:$0xff]
    %v601 = vld [vmem:[#allocation5 + $0x99c] sm:$0xf]
    %v602 = vld [vmem:[#allocation5 + $0x9a0] sm:$0xff]
    %v603 = vld [vmem:[#allocation5 + $0x9a8] sm:$0xff]
    %v604 = vld [vmem:[#allocation5 + $0x9b0] sm:$0xff]
    %v605 = vld [vmem:[#allocation5 + $0x9b8] sm:$0xf]
    %v606 = vld [vmem:[#allocation5 + $0x9bc] sm:$0xff]
    %v607 = vld [vmem:[#allocation5 + $0x9c4] sm:$0xff]
    %v608 = vld [vmem:[#allocation5 + $0x9cc] sm:$0xff]
    %v609 = vld [vmem:[#allocation5 + $0x9d4] sm:$0xf]
    %v610 = vld [vmem:[#allocation5 + $0x9d8] sm:$0xff]
    %v611 = vld [vmem:[#allocation5 + $0x9e0] sm:$0xff]
    %v612 = vld [vmem:[#allocation5 + $0x9e8] sm:$0xff]
    %v613 = vld [vmem:[#allocation5 + $0x9f0] sm:$0xf]
    %v614 = vld [vmem:[#allocation5 + $0x9f4] sm:$0xff]
    %v615 = vld [vmem:[#allocation5 + $0x9fc] sm:$0xff]
    %v616 = vld [vmem:[#allocation5 + $0xa04] sm:$0xff]
    %v617 = vld [vmem:[#allocation5 + $0xa0c] sm:$0xf]
    %v618 = vld [vmem:[#allocation5 + $0xa10] sm:$0xff]
    %v619 = vld [vmem:[#allocation5 + $0xa18] sm:$0xff]
    %v620 = vld [vmem:[#allocation5 + $0xa20] sm:$0xff]
    %v621 = vld [vmem:[#allocation5 + $0xa28] sm:$0xf]
    %v622 = vld [vmem:[#allocation5 + $0xa2c] sm:$0xff]
    %v623 = vld [vmem:[#allocation5 + $0xa34] sm:$0xff]
    %v624 = vld [vmem:[#allocation5 + $0xa3c] sm:$0xff]
    %v625 = vld [vmem:[#allocation5 + $0xa44] sm:$0xf]
    %v626 = vld [vmem:[#allocation5 + $0xa48] sm:$0xff]
    %v627 = vld [vmem:[#allocation5 + $0xa50] sm:$0xff]
    %v628 = vld [vmem:[#allocation5 + $0xa58] sm:$0xff]
    %v629 = vld [vmem:[#allocation5 + $0xa60] sm:$0xf]
    %v630 = vld [vmem:[#allocation5 + $0xa64] sm:$0xff]
    %v631 = vld [vmem:[#allocation5 + $0xa6c] sm:$0xff]
    %v632 = vld [vmem:[#allocation5 + $0xa74] sm:$0xff]
    %v633 = vld [vmem:[#allocation5 + $0xa7c] sm:$0xf]
    %v634 = vld [vmem:[#allocation5 + $0xa80] sm:$0xff]
    %v635 = vld [vmem:[#allocation5 + $0xa88] sm:$0xff]
    %v636 = vld [vmem:[#allocation5 + $0xa90] sm:$0xff]
    %v637 = vld [vmem:[#allocation5 + $0xa98] sm:$0xf]
    %v638 = vld [vmem:[#allocation5 + $0xa9c] sm:$0xff]
    %v639 = vld [vmem:[#allocation5 + $0xaa4] sm:$0xff]
    %v640 = vld [vmem:[#allocation5 + $0xaac] sm:$0xff]
    %v641 = vld [vmem:[#allocation5 + $0xab4] sm:$0xf]
    %v642 = vld [vmem:[#allocation7] sm:$0x7f]
    %v644 = vlaneseq
    %v645 = vshrl.u32 %v644, 7
    %v646 = vsub.s32 0, %v645
    %v647 = vrot.slane %v642, %v646
    %v648 = vlaneseq
    %v649 = vshrl.u32 %v648, 7
    %v650 = vsub.s32 1, %v649
    %v651 = vrot.slane %v642, %v650
    %v652 = vlaneseq
    %v653 = vshrl.u32 %v652, 7
    %v654 = vsub.s32 2, %v653
    %v655 = vrot.slane %v642, %v654
    %v656 = vlaneseq
    %v657 = vshrl.u32 %v656, 7
    %v658 = vsub.s32 3, %v657
    %v659 = vrot.slane %v642, %v658
    %v660 = vlaneseq
    %v661 = vshrl.u32 %v660, 7
    %v662 = vsub.s32 4, %v661
    %v663 = vrot.slane %v642, %v662
    %v664 = vlaneseq
    %v665 = vshrl.u32 %v664, 7
    %v666 = vsub.s32 5, %v665
    %v667 = vrot.slane %v642, %v666
    %v668 = vlaneseq
    %v669 = vshrl.u32 %v668, 7
    %v670 = vsub.s32 6, %v669
    %v671 = vrot.slane %v642, %v670
    %v1071 = vunpack.c.l.b16 %v250
    %v1072 = vunpack.c.h.b16 %v250
    %v1073 = vunpack.c.l.b16 %v251
    %v1074 = vunpack.c.h.b16 %v251
    %v1075 = vunpack.c.l.b16 %v252
    %v1076 = vunpack.c.h.b16 %v252
    %v1077 = vunpack.c.l.b16 %v253
    %v1078 = vunpack.c.l.b16 %v254
    %v1079 = vunpack.c.h.b16 %v254
    %v1080 = vunpack.c.l.b16 %v255
    %v1081 = vunpack.c.h.b16 %v255
    %v1082 = vunpack.c.l.b16 %v256
    %v1083 = vunpack.c.h.b16 %v256
    %v1084 = vunpack.c.l.b16 %v257
    %v1085 = vunpack.c.l.b16 %v258
    %v1086 = vunpack.c.h.b16 %v258
    %v1087 = vunpack.c.l.b16 %v259
    %v1088 = vunpack.c.h.b16 %v259
    %v1089 = vunpack.c.l.b16 %v260
    %v1090 = vunpack.c.h.b16 %v260
    %v1091 = vunpack.c.l.b16 %v261
    %v1092 = vunpack.c.l.b16 %v262
    %v1093 = vunpack.c.h.b16 %v262
    %v1094 = vunpack.c.l.b16 %v263
    %v1095 = vunpack.c.h.b16 %v263
    %v1096 = vunpack.c.l.b16 %v264
    %v1097 = vunpack.c.h.b16 %v264
    %v1098 = vunpack.c.l.b16 %v265
    %v1099 = vunpack.c.l.b16 %v266
    %v1100 = vunpack.c.h.b16 %v266
    %v1101 = vunpack.c.l.b16 %v267
    %v1102 = vunpack.c.h.b16 %v267
    %v1103 = vunpack.c.l.b16 %v268
    %v1104 = vunpack.c.h.b16 %v268
    %v1105 = vunpack.c.l.b16 %v269
    %v1106 = vunpack.c.l.b16 %v270
    %v1107 = vunpack.c.h.b16 %v270
    %v1108 = vunpack.c.l.b16 %v271
    %v1109 = vunpack.c.h.b16 %v271
    %v1110 = vunpack.c.l.b16 %v272
    %v1111 = vunpack.c.h.b16 %v272
    %v1112 = vunpack.c.l.b16 %v273
    %v1113 = vunpack.c.l.b16 %v274
    %v1114 = vunpack.c.h.b16 %v274
    %v1115 = vunpack.c.l.b16 %v275
    %v1116 = vunpack.c.h.b16 %v275
    %v1117 = vunpack.c.l.b16 %v276
    %v1118 = vunpack.c.h.b16 %v276
    %v1119 = vunpack.c.l.b16 %v277
    %v1120 = vunpack.c.l.b16 %v278
    %v1121 = vunpack.c.h.b16 %v278
    %v1122 = vunpack.c.l.b16 %v279
    %v1123 = vunpack.c.h.b16 %v279
    %v1124 = vunpack.c.l.b16 %v280
    %v1125 = vunpack.c.h.b16 %v280
    %v1126 = vunpack.c.l.b16 %v281
    %v1127 = vunpack.c.l.b16 %v282
    %v1128 = vunpack.c.h.b16 %v282
    %v1129 = vunpack.c.l.b16 %v283
    %v1130 = vunpack.c.h.b16 %v283
    %v1131 = vunpack.c.l.b16 %v284
    %v1132 = vunpack.c.h.b16 %v284
    %v1133 = vunpack.c.l.b16 %v285
    %v1134 = vunpack.c.l.b16 %v286
    %v1135 = vunpack.c.h.b16 %v286
    %v1136 = vunpack.c.l.b16 %v287
    %v1137 = vunpack.c.h.b16 %v287
    %v1138 = vunpack.c.l.b16 %v288
    %v1139 = vunpack.c.h.b16 %v288
    %v1140 = vunpack.c.l.b16 %v289
    %v1141 = vunpack.c.l.b16 %v290
    %v1142 = vunpack.c.h.b16 %v290
    %v1143 = vunpack.c.l.b16 %v291
    %v1144 = vunpack.c.h.b16 %v291
    %v1145 = vunpack.c.l.b16 %v292
    %v1146 = vunpack.c.h.b16 %v292
    %v1147 = vunpack.c.l.b16 %v293
    %v1148 = vunpack.c.l.b16 %v294
    %v1149 = vunpack.c.h.b16 %v294
    %v1150 = vunpack.c.l.b16 %v295
    %v1151 = vunpack.c.h.b16 %v295
    %v1152 = vunpack.c.l.b16 %v296
    %v1153 = vunpack.c.h.b16 %v296
    %v1154 = vunpack.c.l.b16 %v297
    %v1155 = vunpack.c.l.b16 %v298
    %v1156 = vunpack.c.h.b16 %v298
    %v1157 = vunpack.c.l.b16 %v299
    %v1158 = vunpack.c.h.b16 %v299
    %v1159 = vunpack.c.l.b16 %v300
    %v1160 = vunpack.c.h.b16 %v300
    %v1161 = vunpack.c.l.b16 %v301
    %v1162 = vunpack.c.l.b16 %v302
    %v1163 = vunpack.c.h.b16 %v302
    %v1164 = vunpack.c.l.b16 %v303
    %v1165 = vunpack.c.h.b16 %v303
    %v1166 = vunpack.c.l.b16 %v304
    %v1167 = vunpack.c.h.b16 %v304
    %v1168 = vunpack.c.l.b16 %v305
    %v1169 = vunpack.c.l.b16 %v306
    %v1170 = vunpack.c.h.b16 %v306
    %v1171 = vunpack.c.l.b16 %v307
    %v1172 = vunpack.c.h.b16 %v307
    %v1173 = vunpack.c.l.b16 %v308
    %v1174 = vunpack.c.h.b16 %v308
    %v1175 = vunpack.c.l.b16 %v309
    %v1176 = vunpack.c.l.b16 %v310
    %v1177 = vunpack.c.h.b16 %v310
    %v1178 = vunpack.c.l.b16 %v311
    %v1179 = vunpack.c.h.b16 %v311
    %v1180 = vunpack.c.l.b16 %v312
    %v1181 = vunpack.c.h.b16 %v312
    %v1182 = vunpack.c.l.b16 %v313
    %v1183 = vunpack.c.l.b16 %v314
    %v1184 = vunpack.c.h.b16 %v314
    %v1185 = vunpack.c.l.b16 %v315
    %v1186 = vunpack.c.h.b16 %v315
    %v1187 = vunpack.c.l.b16 %v316
    %v1188 = vunpack.c.h.b16 %v316
    %v1189 = vunpack.c.l.b16 %v317
    %v1190 = vunpack.c.l.b16 %v318
    %v1191 = vunpack.c.h.b16 %v318
    %v1192 = vunpack.c.l.b16 %v319
    %v1193 = vunpack.c.h.b16 %v319
    %v1194 = vunpack.c.l.b16 %v320
    %v1195 = vunpack.c.h.b16 %v320
    %v1196 = vunpack.c.l.b16 %v321
    %v1197 = vunpack.c.l.b16 %v322
    %v1198 = vunpack.c.h.b16 %v322
    %v1199 = vunpack.c.l.b16 %v323
    %v1200 = vunpack.c.h.b16 %v323
    %v1201 = vunpack.c.l.b16 %v324
    %v1202 = vunpack.c.h.b16 %v324
    %v1203 = vunpack.c.l.b16 %v325
    %v1204 = vunpack.c.l.b16 %v326
    %v1205 = vunpack.c.h.b16 %v326
    %v1206 = vunpack.c.l.b16 %v327
    %v1207 = vunpack.c.h.b16 %v327
    %v1208 = vunpack.c.l.b16 %v328
    %v1209 = vunpack.c.h.b16 %v328
    %v1210 = vunpack.c.l.b16 %v329
    %v1211 = vunpack.c.l.b16 %v330
    %v1212 = vunpack.c.h.b16 %v330
    %v1213 = vunpack.c.l.b16 %v331
    %v1214 = vunpack.c.h.b16 %v331
    %v1215 = vunpack.c.l.b16 %v332
    %v1216 = vunpack.c.h.b16 %v332
    %v1217 = vunpack.c.l.b16 %v333
    %v1218 = vunpack.c.l.b16 %v334
    %v1219 = vunpack.c.h.b16 %v334
    %v1220 = vunpack.c.l.b16 %v335
    %v1221 = vunpack.c.h.b16 %v335
    %v1222 = vunpack.c.l.b16 %v336
    %v1223 = vunpack.c.h.b16 %v336
    %v1224 = vunpack.c.l.b16 %v337
    %v1225 = vunpack.c.l.b16 %v338
    %v1226 = vunpack.c.h.b16 %v338
    %v1227 = vunpack.c.l.b16 %v339
    %v1228 = vunpack.c.h.b16 %v339
    %v1229 = vunpack.c.l.b16 %v340
    %v1230 = vunpack.c.h.b16 %v340
    %v1231 = vunpack.c.l.b16 %v341
    %v1232 = vunpack.c.l.b16 %v342
    %v1233 = vunpack.c.h.b16 %v342
    %v1234 = vunpack.c.l.b16 %v343
    %v1235 = vunpack.c.h.b16 %v343
    %v1236 = vunpack.c.l.b16 %v344
    %v1237 = vunpack.c.h.b16 %v344
    %v1238 = vunpack.c.l.b16 %v345
    %v1239 = vunpack.c.l.b16 %v346
    %v1240 = vunpack.c.h.b16 %v346
    %v1241 = vunpack.c.l.b16 %v347
    %v1242 = vunpack.c.h.b16 %v347
    %v1243 = vunpack.c.l.b16 %v348
    %v1244 = vunpack.c.h.b16 %v348
    %v1245 = vunpack.c.l.b16 %v349
    %v1246 = vunpack.c.l.b16 %v350
    %v1247 = vunpack.c.h.b16 %v350
    %v1248 = vunpack.c.l.b16 %v351
    %v1249 = vunpack.c.h.b16 %v351
    %v1250 = vunpack.c.l.b16 %v352
    %v1251 = vunpack.c.h.b16 %v352
    %v1252 = vunpack.c.l.b16 %v353
    %v1253 = vunpack.c.l.b16 %v354
    %v1254 = vunpack.c.h.b16 %v354
    %v1255 = vunpack.c.l.b16 %v355
    %v1256 = vunpack.c.h.b16 %v355
    %v1257 = vunpack.c.l.b16 %v356
    %v1258 = vunpack.c.h.b16 %v356
    %v1259 = vunpack.c.l.b16 %v357
    %v1260 = vunpack.c.l.b16 %v358
    %v1261 = vunpack.c.h.b16 %v358
    %v1262 = vunpack.c.l.b16 %v359
    %v1263 = vunpack.c.h.b16 %v359
    %v1264 = vunpack.c.l.b16 %v360
    %v1265 = vunpack.c.h.b16 %v360
    %v1266 = vunpack.c.l.b16 %v361
    %v1267 = vunpack.c.l.b16 %v362
    %v1268 = vunpack.c.h.b16 %v362
    %v1269 = vunpack.c.l.b16 %v363
    %v1270 = vunpack.c.h.b16 %v363
    %v1271 = vunpack.c.l.b16 %v364
    %v1272 = vunpack.c.h.b16 %v364
    %v1273 = vunpack.c.l.b16 %v365
    %v1274 = vunpack.c.l.b16 %v366
    %v1275 = vunpack.c.h.b16 %v366
    %v1276 = vunpack.c.l.b16 %v367
    %v1277 = vunpack.c.h.b16 %v367
    %v1278 = vunpack.c.l.b16 %v368
    %v1279 = vunpack.c.h.b16 %v368
    %v1280 = vunpack.c.l.b16 %v369
    %v1281 = vunpack.c.l.b16 %v370
    %v1282 = vunpack.c.h.b16 %v370
    %v1283 = vunpack.c.l.b16 %v371
    %v1284 = vunpack.c.h.b16 %v371
    %v1285 = vunpack.c.l.b16 %v372
    %v1286 = vunpack.c.h.b16 %v372
    %v1287 = vunpack.c.l.b16 %v373
    %v1288 = vunpack.c.l.b16 %v374
    %v1289 = vunpack.c.h.b16 %v374
    %v1290 = vunpack.c.l.b16 %v375
    %v1291 = vunpack.c.h.b16 %v375
    %v1292 = vunpack.c.l.b16 %v376
    %v1293 = vunpack.c.h.b16 %v376
    %v1294 = vunpack.c.l.b16 %v377
    %v1295 = vunpack.c.l.b16 %v378
    %v1296 = vunpack.c.h.b16 %v378
    %v1297 = vunpack.c.l.b16 %v379
    %v1298 = vunpack.c.h.b16 %v379
    %v1299 = vunpack.c.l.b16 %v380
    %v1300 = vunpack.c.h.b16 %v380
    %v1301 = vunpack.c.l.b16 %v381
    %v1302 = vunpack.c.l.b16 %v382
    %v1303 = vunpack.c.h.b16 %v382
    %v1304 = vunpack.c.l.b16 %v383
    %v1305 = vunpack.c.h.b16 %v383
    %v1306 = vunpack.c.l.b16 %v384
    %v1307 = vunpack.c.h.b16 %v384
    %v1308 = vunpack.c.l.b16 %v385
    %v1309 = vunpack.c.l.b16 %v386
    %v1310 = vunpack.c.h.b16 %v386
    %v1311 = vunpack.c.l.b16 %v387
    %v1312 = vunpack.c.h.b16 %v387
    %v1313 = vunpack.c.l.b16 %v388
    %v1314 = vunpack.c.h.b16 %v388
    %v1315 = vunpack.c.l.b16 %v389
    %v1316 = vunpack.c.l.b16 %v390
    %v1317 = vunpack.c.h.b16 %v390
    %v1318 = vunpack.c.l.b16 %v391
    %v1319 = vunpack.c.h.b16 %v391
    %v1320 = vunpack.c.l.b16 %v392
    %v1321 = vunpack.c.h.b16 %v392
    %v1322 = vunpack.c.l.b16 %v393
    %v1323 = vunpack.c.l.b16 %v394
    %v1324 = vunpack.c.h.b16 %v394
    %v1325 = vunpack.c.l.b16 %v395
    %v1326 = vunpack.c.h.b16 %v395
    %v1327 = vunpack.c.l.b16 %v396
    %v1328 = vunpack.c.h.b16 %v396
    %v1329 = vunpack.c.l.b16 %v397
    %v1330 = vunpack.c.l.b16 %v398
    %v1331 = vunpack.c.h.b16 %v398
    %v1332 = vunpack.c.l.b16 %v399
    %v1333 = vunpack.c.h.b16 %v399
    %v1334 = vunpack.c.l.b16 %v400
    %v1335 = vunpack.c.h.b16 %v400
    %v1336 = vunpack.c.l.b16 %v401
    %v1337 = vunpack.c.l.b16 %v402
    %v1338 = vunpack.c.h.b16 %v402
    %v1339 = vunpack.c.l.b16 %v403
    %v1340 = vunpack.c.h.b16 %v403
    %v1341 = vunpack.c.l.b16 %v404
    %v1342 = vunpack.c.h.b16 %v404
    %v1343 = vunpack.c.l.b16 %v405
    %v1344 = vunpack.c.l.b16 %v406
    %v1345 = vunpack.c.h.b16 %v406
    %v1346 = vunpack.c.l.b16 %v407
    %v1347 = vunpack.c.h.b16 %v407
    %v1348 = vunpack.c.l.b16 %v408
    %v1349 = vunpack.c.h.b16 %v408
    %v1350 = vunpack.c.l.b16 %v409
    %v1351 = vunpack.c.l.b16 %v410
    %v1352 = vunpack.c.h.b16 %v410
    %v1353 = vunpack.c.l.b16 %v411
    %v1354 = vunpack.c.h.b16 %v411
    %v1355 = vunpack.c.l.b16 %v412
    %v1356 = vunpack.c.h.b16 %v412
    %v1357 = vunpack.c.l.b16 %v413
    %v1358 = vunpack.c.l.b16 %v414
    %v1359 = vunpack.c.h.b16 %v414
    %v1360 = vunpack.c.l.b16 %v415
    %v1361 = vunpack.c.h.b16 %v415
    %v1362 = vunpack.c.l.b16 %v416
    %v1363 = vunpack.c.h.b16 %v416
    %v1364 = vunpack.c.l.b16 %v417
    %v1365 = vunpack.c.l.b16 %v418
    %v1366 = vunpack.c.h.b16 %v418
    %v1367 = vunpack.c.l.b16 %v419
    %v1368 = vunpack.c.h.b16 %v419
    %v1369 = vunpack.c.l.b16 %v420
    %v1370 = vunpack.c.h.b16 %v420
    %v1371 = vunpack.c.l.b16 %v421
    %v1372 = vunpack.c.l.b16 %v422
    %v1373 = vunpack.c.h.b16 %v422
    %v1374 = vunpack.c.l.b16 %v423
    %v1375 = vunpack.c.h.b16 %v423
    %v1376 = vunpack.c.l.b16 %v424
    %v1377 = vunpack.c.h.b16 %v424
    %v1378 = vunpack.c.l.b16 %v425
    %v1379 = vunpack.c.l.b16 %v426
    %v1380 = vunpack.c.h.b16 %v426
    %v1381 = vunpack.c.l.b16 %v427
    %v1382 = vunpack.c.h.b16 %v427
    %v1383 = vunpack.c.l.b16 %v428
    %v1384 = vunpack.c.h.b16 %v428
    %v1385 = vunpack.c.l.b16 %v429
    %v1386 = vunpack.c.l.b16 %v430
    %v1387 = vunpack.c.h.b16 %v430
    %v1388 = vunpack.c.l.b16 %v431
    %v1389 = vunpack.c.h.b16 %v431
    %v1390 = vunpack.c.l.b16 %v432
    %v1391 = vunpack.c.h.b16 %v432
    %v1392 = vunpack.c.l.b16 %v433
    %v1393 = vunpack.c.l.b16 %v434
    %v1394 = vunpack.c.h.b16 %v434
    %v1395 = vunpack.c.l.b16 %v435
    %v1396 = vunpack.c.h.b16 %v435
    %v1397 = vunpack.c.l.b16 %v436
    %v1398 = vunpack.c.h.b16 %v436
    %v1399 = vunpack.c.l.b16 %v437
    %v1400 = vunpack.c.l.b16 %v438
    %v1401 = vunpack.c.h.b16 %v438
    %v1402 = vunpack.c.l.b16 %v439
    %v1403 = vunpack.c.h.b16 %v439
    %v1404 = vunpack.c.l.b16 %v440
    %v1405 = vunpack.c.h.b16 %v440
    %v1406 = vunpack.c.l.b16 %v441
    %v1407 = vunpack.c.l.b16 %v442
    %v1408 = vunpack.c.h.b16 %v442
    %v1409 = vunpack.c.l.b16 %v443
    %v1410 = vunpack.c.h.b16 %v443
    %v1411 = vunpack.c.l.b16 %v444
    %v1412 = vunpack.c.h.b16 %v444
    %v1413 = vunpack.c.l.b16 %v445
    %v1414 = vunpack.c.l.b16 %v446
    %v1415 = vunpack.c.h.b16 %v446
    %v1416 = vunpack.c.l.b16 %v447
    %v1417 = vunpack.c.h.b16 %v447
    %v1418 = vunpack.c.l.b16 %v448
    %v1419 = vunpack.c.h.b16 %v448
    %v1420 = vunpack.c.l.b16 %v449
    %v1421 = vunpack.c.l.b16 %v450
    %v1422 = vunpack.c.h.b16 %v450
    %v1423 = vunpack.c.l.b16 %v451
    %v1424 = vunpack.c.h.b16 %v451
    %v1425 = vunpack.c.l.b16 %v452
    %v1426 = vunpack.c.h.b16 %v452
    %v1427 = vunpack.c.l.b16 %v453
    %v1428 = vunpack.c.l.b16 %v454
    %v1429 = vunpack.c.h.b16 %v454
    %v1430 = vunpack.c.l.b16 %v455
    %v1431 = vunpack.c.h.b16 %v455
    %v1432 = vunpack.c.l.b16 %v456
    %v1433 = vunpack.c.h.b16 %v456
    %v1434 = vunpack.c.l.b16 %v457
    %v1435 = vunpack.c.l.b16 %v458
    %v1436 = vunpack.c.h.b16 %v458
    %v1437 = vunpack.c.l.b16 %v459
    %v1438 = vunpack.c.h.b16 %v459
    %v1439 = vunpack.c.l.b16 %v460
    %v1440 = vunpack.c.h.b16 %v460
    %v1441 = vunpack.c.l.b16 %v461
    %v1442 = vunpack.c.l.b16 %v462
    %v1443 = vunpack.c.h.b16 %v462
    %v1444 = vunpack.c.l.b16 %v463
    %v1445 = vunpack.c.h.b16 %v463
    %v1446 = vunpack.c.l.b16 %v464
    %v1447 = vunpack.c.h.b16 %v464
    %v1448 = vunpack.c.l.b16 %v465
    %v1449 = vunpack.c.l.b16 %v466
    %v1450 = vunpack.c.h.b16 %v466
    %v1451 = vunpack.c.l.b16 %v467
    %v1452 = vunpack.c.h.b16 %v467
    %v1453 = vunpack.c.l.b16 %v468
    %v1454 = vunpack.c.h.b16 %v468
    %v1455 = vunpack.c.l.b16 %v469
    %v1456 = vunpack.c.l.b16 %v470
    %v1457 = vunpack.c.h.b16 %v470
    %v1458 = vunpack.c.l.b16 %v471
    %v1459 = vunpack.c.h.b16 %v471
    %v1460 = vunpack.c.l.b16 %v472
    %v1461 = vunpack.c.h.b16 %v472
    %v1462 = vunpack.c.l.b16 %v473
    %v1463 = vunpack.c.l.b16 %v474
    %v1464 = vunpack.c.h.b16 %v474
    %v1465 = vunpack.c.l.b16 %v475
    %v1466 = vunpack.c.h.b16 %v475
    %v1467 = vunpack.c.l.b16 %v476
    %v1468 = vunpack.c.h.b16 %v476
    %v1469 = vunpack.c.l.b16 %v477
    %v1470 = vunpack.c.l.b16 %v478
    %v1471 = vunpack.c.h.b16 %v478
    %v1472 = vunpack.c.l.b16 %v479
    %v1473 = vunpack.c.h.b16 %v479
    %v1474 = vunpack.c.l.b16 %v480
    %v1475 = vunpack.c.h.b16 %v480
    %v1476 = vunpack.c.l.b16 %v481
    %v1477 = vunpack.c.l.b16 %v482
    %v1478 = vunpack.c.h.b16 %v482
    %v1479 = vunpack.c.l.b16 %v483
    %v1480 = vunpack.c.h.b16 %v483
    %v1481 = vunpack.c.l.b16 %v484
    %v1482 = vunpack.c.h.b16 %v484
    %v1483 = vunpack.c.l.b16 %v485
    %v1484 = vunpack.c.l.b16 %v486
    %v1485 = vunpack.c.h.b16 %v486
    %v1486 = vunpack.c.l.b16 %v487
    %v1487 = vunpack.c.h.b16 %v487
    %v1488 = vunpack.c.l.b16 %v488
    %v1489 = vunpack.c.h.b16 %v488
    %v1490 = vunpack.c.l.b16 %v489
    %v1491 = vunpack.c.l.b16 %v490
    %v1492 = vunpack.c.h.b16 %v490
    %v1493 = vunpack.c.l.b16 %v491
    %v1494 = vunpack.c.h.b16 %v491
    %v1495 = vunpack.c.l.b16 %v492
    %v1496 = vunpack.c.h.b16 %v492
    %v1497 = vunpack.c.l.b16 %v493
    %v1498 = vunpack.c.l.b16 %v494
    %v1499 = vunpack.c.h.b16 %v494
    %v1500 = vunpack.c.l.b16 %v495
    %v1501 = vunpack.c.h.b16 %v495
    %v1502 = vunpack.c.l.b16 %v496
    %v1503 = vunpack.c.h.b16 %v496
    %v1504 = vunpack.c.l.b16 %v497
    %v1505 = vunpack.c.l.b16 %v498
    %v1506 = vunpack.c.h.b16 %v498
    %v1507 = vunpack.c.l.b16 %v499
    %v1508 = vunpack.c.h.b16 %v499
    %v1509 = vunpack.c.l.b16 %v500
    %v1510 = vunpack.c.h.b16 %v500
    %v1511 = vunpack.c.l.b16 %v501
    %v1512 = vunpack.c.l.b16 %v502
    %v1513 = vunpack.c.h.b16 %v502
    %v1514 = vunpack.c.l.b16 %v503
    %v1515 = vunpack.c.h.b16 %v503
    %v1516 = vunpack.c.l.b16 %v504
    %v1517 = vunpack.c.h.b16 %v504
    %v1518 = vunpack.c.l.b16 %v505
    %v1519 = vunpack.c.l.b16 %v506
    %v1520 = vunpack.c.h.b16 %v506
    %v1521 = vunpack.c.l.b16 %v507
    %v1522 = vunpack.c.h.b16 %v507
    %v1523 = vunpack.c.l.b16 %v508
    %v1524 = vunpack.c.h.b16 %v508
    %v1525 = vunpack.c.l.b16 %v509
    %v1526 = vunpack.c.l.b16 %v510
    %v1527 = vunpack.c.h.b16 %v510
    %v1528 = vunpack.c.l.b16 %v511
    %v1529 = vunpack.c.h.b16 %v511
    %v1530 = vunpack.c.l.b16 %v512
    %v1531 = vunpack.c.h.b16 %v512
    %v1532 = vunpack.c.l.b16 %v513
    %v1533 = vunpack.c.l.b16 %v514
    %v1534 = vunpack.c.h.b16 %v514
    %v1535 = vunpack.c.l.b16 %v515
    %v1536 = vunpack.c.h.b16 %v515
    %v1537 = vunpack.c.l.b16 %v516
    %v1538 = vunpack.c.h.b16 %v516
    %v1539 = vunpack.c.l.b16 %v517
    %v1540 = vunpack.c.l.b16 %v518
    %v1541 = vunpack.c.h.b16 %v518
    %v1542 = vunpack.c.l.b16 %v519
    %v1543 = vunpack.c.h.b16 %v519
    %v1544 = vunpack.c.l.b16 %v520
    %v1545 = vunpack.c.h.b16 %v520
    %v1546 = vunpack.c.l.b16 %v521
    %v1547 = vunpack.c.l.b16 %v522
    %v1548 = vunpack.c.h.b16 %v522
    %v1549 = vunpack.c.l.b16 %v523
    %v1550 = vunpack.c.h.b16 %v523
    %v1551 = vunpack.c.l.b16 %v524
    %v1552 = vunpack.c.h.b16 %v524
    %v1553 = vunpack.c.l.b16 %v525
    %v1554 = vunpack.c.l.b16 %v526
    %v1555 = vunpack.c.h.b16 %v526
    %v1556 = vunpack.c.l.b16 %v527
    %v1557 = vunpack.c.h.b16 %v527
    %v1558 = vunpack.c.l.b16 %v528
    %v1559 = vunpack.c.h.b16 %v528
    %v1560 = vunpack.c.l.b16 %v529
    %v1561 = vunpack.c.l.b16 %v530
    %v1562 = vunpack.c.h.b16 %v530
    %v1563 = vunpack.c.l.b16 %v531
    %v1564 = vunpack.c.h.b16 %v531
    %v1565 = vunpack.c.l.b16 %v532
    %v1566 = vunpack.c.h.b16 %v532
    %v1567 = vunpack.c.l.b16 %v533
    %v1568 = vunpack.c.l.b16 %v534
    %v1569 = vunpack.c.h.b16 %v534
    %v1570 = vunpack.c.l.b16 %v535
    %v1571 = vunpack.c.h.b16 %v535
    %v1572 = vunpack.c.l.b16 %v536
    %v1573 = vunpack.c.h.b16 %v536
    %v1574 = vunpack.c.l.b16 %v537
    %v1575 = vunpack.c.l.b16 %v538
    %v1576 = vunpack.c.h.b16 %v538
    %v1577 = vunpack.c.l.b16 %v539
    %v1578 = vunpack.c.h.b16 %v539
    %v1579 = vunpack.c.l.b16 %v540
    %v1580 = vunpack.c.h.b16 %v540
    %v1581 = vunpack.c.l.b16 %v541
    %v1582 = vunpack.c.l.b16 %v542
    %v1583 = vunpack.c.h.b16 %v542
    %v1584 = vunpack.c.l.b16 %v543
    %v1585 = vunpack.c.h.b16 %v543
    %v1586 = vunpack.c.l.b16 %v544
    %v1587 = vunpack.c.h.b16 %v544
    %v1588 = vunpack.c.l.b16 %v545
    %v1589 = vunpack.c.l.b16 %v546
    %v1590 = vunpack.c.h.b16 %v546
    %v1591 = vunpack.c.l.b16 %v547
    %v1592 = vunpack.c.h.b16 %v547
    %v1593 = vunpack.c.l.b16 %v548
    %v1594 = vunpack.c.h.b16 %v548
    %v1595 = vunpack.c.l.b16 %v549
    %v1596 = vunpack.c.l.b16 %v550
    %v1597 = vunpack.c.h.b16 %v550
    %v1598 = vunpack.c.l.b16 %v551
    %v1599 = vunpack.c.h.b16 %v551
    %v1600 = vunpack.c.l.b16 %v552
    %v1601 = vunpack.c.h.b16 %v552
    %v1602 = vunpack.c.l.b16 %v553
    %v1603 = vunpack.c.l.b16 %v554
    %v1604 = vunpack.c.h.b16 %v554
    %v1605 = vunpack.c.l.b16 %v555
    %v1606 = vunpack.c.h.b16 %v555
    %v1607 = vunpack.c.l.b16 %v556
    %v1608 = vunpack.c.h.b16 %v556
    %v1609 = vunpack.c.l.b16 %v557
    %v1610 = vunpack.c.l.b16 %v558
    %v1611 = vunpack.c.h.b16 %v558
    %v1612 = vunpack.c.l.b16 %v559
    %v1613 = vunpack.c.h.b16 %v559
    %v1614 = vunpack.c.l.b16 %v560
    %v1615 = vunpack.c.h.b16 %v560
    %v1616 = vunpack.c.l.b16 %v561
    %v1617 = vunpack.c.l.b16 %v562
    %v1618 = vunpack.c.h.b16 %v562
    %v1619 = vunpack.c.l.b16 %v563
    %v1620 = vunpack.c.h.b16 %v563
    %v1621 = vunpack.c.l.b16 %v564
    %v1622 = vunpack.c.h.b16 %v564
    %v1623 = vunpack.c.l.b16 %v565
    %v1624 = vunpack.c.l.b16 %v566
    %v1625 = vunpack.c.h.b16 %v566
    %v1626 = vunpack.c.l.b16 %v567
    %v1627 = vunpack.c.h.b16 %v567
    %v1628 = vunpack.c.l.b16 %v568
    %v1629 = vunpack.c.h.b16 %v568
    %v1630 = vunpack.c.l.b16 %v569
    %v1631 = vunpack.c.l.b16 %v570
    %v1632 = vunpack.c.h.b16 %v570
    %v1633 = vunpack.c.l.b16 %v571
    %v1634 = vunpack.c.h.b16 %v571
    %v1635 = vunpack.c.l.b16 %v572
    %v1636 = vunpack.c.h.b16 %v572
    %v1637 = vunpack.c.l.b16 %v573
    %v1638 = vunpack.c.l.b16 %v574
    %v1639 = vunpack.c.h.b16 %v574
    %v1640 = vunpack.c.l.b16 %v575
    %v1641 = vunpack.c.h.b16 %v575
    %v1642 = vunpack.c.l.b16 %v576
    %v1643 = vunpack.c.h.b16 %v576
    %v1644 = vunpack.c.l.b16 %v577
    %v1645 = vunpack.c.l.b16 %v578
    %v1646 = vunpack.c.h.b16 %v578
    %v1647 = vunpack.c.l.b16 %v579
    %v1648 = vunpack.c.h.b16 %v579
    %v1649 = vunpack.c.l.b16 %v580
    %v1650 = vunpack.c.h.b16 %v580
    %v1651 = vunpack.c.l.b16 %v581
    %v1652 = vunpack.c.l.b16 %v582
    %v1653 = vunpack.c.h.b16 %v582
    %v1654 = vunpack.c.l.b16 %v583
    %v1655 = vunpack.c.h.b16 %v583
    %v1656 = vunpack.c.l.b16 %v584
    %v1657 = vunpack.c.h.b16 %v584
    %v1658 = vunpack.c.l.b16 %v585
    %v1659 = vunpack.c.l.b16 %v586
    %v1660 = vunpack.c.h.b16 %v586
    %v1661 = vunpack.c.l.b16 %v587
    %v1662 = vunpack.c.h.b16 %v587
    %v1663 = vunpack.c.l.b16 %v588
    %v1664 = vunpack.c.h.b16 %v588
    %v1665 = vunpack.c.l.b16 %v589
    %v1666 = vunpack.c.l.b16 %v590
    %v1667 = vunpack.c.h.b16 %v590
    %v1668 = vunpack.c.l.b16 %v591
    %v1669 = vunpack.c.h.b16 %v591
    %v1670 = vunpack.c.l.b16 %v592
    %v1671 = vunpack.c.h.b16 %v592
    %v1672 = vunpack.c.l.b16 %v593
    %v1673 = vunpack.c.l.b16 %v594
    %v1674 = vunpack.c.h.b16 %v594
    %v1675 = vunpack.c.l.b16 %v595
    %v1676 = vunpack.c.h.b16 %v595
    %v1677 = vunpack.c.l.b16 %v596
    %v1678 = vunpack.c.h.b16 %v596
    %v1679 = vunpack.c.l.b16 %v597
    %v1680 = vunpack.c.l.b16 %v598
    %v1681 = vunpack.c.h.b16 %v598
    %v1682 = vunpack.c.l.b16 %v599
    %v1683 = vunpack.c.h.b16 %v599
    %v1684 = vunpack.c.l.b16 %v600
    %v1685 = vunpack.c.h.b16 %v600
    %v1686 = vunpack.c.l.b16 %v601
    %v1687 = vunpack.c.l.b16 %v602
    %v1688 = vunpack.c.h.b16 %v602
    %v1689 = vunpack.c.l.b16 %v603
    %v1690 = vunpack.c.h.b16 %v603
    %v1691 = vunpack.c.l.b16 %v604
    %v1692 = vunpack.c.h.b16 %v604
    %v1693 = vunpack.c.l.b16 %v605
    %v1694 = vunpack.c.l.b16 %v606
    %v1695 = vunpack.c.h.b16 %v606
    %v1696 = vunpack.c.l.b16 %v607
    %v1697 = vunpack.c.h.b16 %v607
    %v1698 = vunpack.c.l.b16 %v608
    %v1699 = vunpack.c.h.b16 %v608
    %v1700 = vunpack.c.l.b16 %v609
    %v1701 = vunpack.c.l.b16 %v610
    %v1702 = vunpack.c.h.b16 %v610
    %v1703 = vunpack.c.l.b16 %v611
    %v1704 = vunpack.c.h.b16 %v611
    %v1705 = vunpack.c.l.b16 %v612
    %v1706 = vunpack.c.h.b16 %v612
    %v1707 = vunpack.c.l.b16 %v613
    %v1708 = vunpack.c.l.b16 %v614
    %v1709 = vunpack.c.h.b16 %v614
    %v1710 = vunpack.c.l.b16 %v615
    %v1711 = vunpack.c.h.b16 %v615
    %v1712 = vunpack.c.l.b16 %v616
    %v1713 = vunpack.c.h.b16 %v616
    %v1714 = vunpack.c.l.b16 %v617
    %v1715 = vunpack.c.l.b16 %v618
    %v1716 = vunpack.c.h.b16 %v618
    %v1717 = vunpack.c.l.b16 %v619
    %v1718 = vunpack.c.h.b16 %v619
    %v1719 = vunpack.c.l.b16 %v620
    %v1720 = vunpack.c.h.b16 %v620
    %v1721 = vunpack.c.l.b16 %v621
    %v1722 = vunpack.c.l.b16 %v622
    %v1723 = vunpack.c.h.b16 %v622
    %v1724 = vunpack.c.l.b16 %v623
    %v1725 = vunpack.c.h.b16 %v623
    %v1726 = vunpack.c.l.b16 %v624
    %v1727 = vunpack.c.h.b16 %v624
    %v1728 = vunpack.c.l.b16 %v625
    %v1729 = vunpack.c.l.b16 %v626
    %v1730 = vunpack.c.h.b16 %v626
    %v1731 = vunpack.c.l.b16 %v627
    %v1732 = vunpack.c.h.b16 %v627
    %v1733 = vunpack.c.l.b16 %v628
    %v1734 = vunpack.c.h.b16 %v628
    %v1735 = vunpack.c.l.b16 %v629
    %v1736 = vunpack.c.l.b16 %v630
    %v1737 = vunpack.c.h.b16 %v630
    %v1738 = vunpack.c.l.b16 %v631
    %v1739 = vunpack.c.h.b16 %v631
    %v1740 = vunpack.c.l.b16 %v632
    %v1741 = vunpack.c.h.b16 %v632
    %v1742 = vunpack.c.l.b16 %v633
    %v1743 = vunpack.c.l.b16 %v634
    %v1744 = vunpack.c.h.b16 %v634
    %v1745 = vunpack.c.l.b16 %v635
    %v1746 = vunpack.c.h.b16 %v635
    %v1747 = vunpack.c.l.b16 %v636
    %v1748 = vunpack.c.h.b16 %v636
    %v1749 = vunpack.c.l.b16 %v637
    %v1750 = vunpack.c.l.b16 %v638
    %v1751 = vunpack.c.h.b16 %v638
    %v1752 = vunpack.c.l.b16 %v639
    %v1753 = vunpack.c.h.b16 %v639
    %v1754 = vunpack.c.l.b16 %v640
    %v1755 = vunpack.c.h.b16 %v640
    %v1756 = vunpack.c.l.b16 %v641
    %v1757 = vpack.c.b16 %v1078, %v1071
    %v1758 = vpack.c.b16 %v1079, %v1072
    %v1759 = vpack.c.b16 %v1080, %v1073
    %v1760 = vpack.c.b16 %v1081, %v1074
    %v1761 = vpack.c.b16 %v1082, %v1075
    %v1762 = vpack.c.b16 %v1083, %v1076
    %v1763 = vpack.c.b16 %v1084, %v1077
    %v1764 = vpack.c.b16 %v1092, %v1085
    %v1765 = vpack.c.b16 %v1093, %v1086
    %v1766 = vpack.c.b16 %v1094, %v1087
    %v1767 = vpack.c.b16 %v1095, %v1088
    %v1768 = vpack.c.b16 %v1096, %v1089
    %v1769 = vpack.c.b16 %v1097, %v1090
    %v1770 = vpack.c.b16 %v1098, %v1091
    %v1771 = vpack.c.b16 %v1106, %v1099
    %v1772 = vpack.c.b16 %v1107, %v1100
    %v1773 = vpack.c.b16 %v1108, %v1101
    %v1774 = vpack.c.b16 %v1109, %v1102
    %v1775 = vpack.c.b16 %v1110, %v1103
    %v1776 = vpack.c.b16 %v1111, %v1104
    %v1777 = vpack.c.b16 %v1112, %v1105
    %v1778 = vpack.c.b16 %v1120, %v1113
    %v1779 = vpack.c.b16 %v1121, %v1114
    %v1780 = vpack.c.b16 %v1122, %v1115
    %v1781 = vpack.c.b16 %v1123, %v1116
    %v1782 = vpack.c.b16 %v1124, %v1117
    %v1783 = vpack.c.b16 %v1125, %v1118
    %v1784 = vpack.c.b16 %v1126, %v1119
    %v1785 = vpack.c.b16 %v1134, %v1127
    %v1786 = vpack.c.b16 %v1135, %v1128
    %v1787 = vpack.c.b16 %v1136, %v1129
    %v1788 = vpack.c.b16 %v1137, %v1130
    %v1789 = vpack.c.b16 %v1138, %v1131
    %v1790 = vpack.c.b16 %v1139, %v1132
    %v1791 = vpack.c.b16 %v1140, %v1133
    %v1792 = vpack.c.b16 %v1148, %v1141
    %v1793 = vpack.c.b16 %v1149, %v1142
    %v1794 = vpack.c.b16 %v1150, %v1143
    %v1795 = vpack.c.b16 %v1151, %v1144
    %v1796 = vpack.c.b16 %v1152, %v1145
    %v1797 = vpack.c.b16 %v1153, %v1146
    %v1798 = vpack.c.b16 %v1154, %v1147
    %v1799 = vpack.c.b16 %v1162, %v1155
    %v1800 = vpack.c.b16 %v1163, %v1156
    %v1801 = vpack.c.b16 %v1164, %v1157
    %v1802 = vpack.c.b16 %v1165, %v1158
    %v1803 = vpack.c.b16 %v1166, %v1159
    %v1804 = vpack.c.b16 %v1167, %v1160
    %v1805 = vpack.c.b16 %v1168, %v1161
    %v1806 = vpack.c.b16 %v1176, %v1169
    %v1807 = vpack.c.b16 %v1177, %v1170
    %v1808 = vpack.c.b16 %v1178, %v1171
    %v1809 = vpack.c.b16 %v1179, %v1172
    %v1810 = vpack.c.b16 %v1180, %v1173
    %v1811 = vpack.c.b16 %v1181, %v1174
    %v1812 = vpack.c.b16 %v1182, %v1175
    %v1813 = vpack.c.b16 %v1190, %v1183
    %v1814 = vpack.c.b16 %v1191, %v1184
    %v1815 = vpack.c.b16 %v1192, %v1185
    %v1816 = vpack.c.b16 %v1193, %v1186
    %v1817 = vpack.c.b16 %v1194, %v1187
    %v1818 = vpack.c.b16 %v1195, %v1188
    %v1819 = vpack.c.b16 %v1196, %v1189
    %v1820 = vpack.c.b16 %v1204, %v1197
    %v1821 = vpack.c.b16 %v1205, %v1198
    %v1822 = vpack.c.b16 %v1206, %v1199
    %v1823 = vpack.c.b16 %v1207, %v1200
    %v1824 = vpack.c.b16 %v1208, %v1201
    %v1825 = vpack.c.b16 %v1209, %v1202
    %v1826 = vpack.c.b16 %v1210, %v1203
    %v1827 = vpack.c.b16 %v1218, %v1211
    %v1828 = vpack.c.b16 %v1219, %v1212
    %v1829 = vpack.c.b16 %v1220, %v1213
    %v1830 = vpack.c.b16 %v1221, %v1214
    %v1831 = vpack.c.b16 %v1222, %v1215
    %v1832 = vpack.c.b16 %v1223, %v1216
    %v1833 = vpack.c.b16 %v1224, %v1217
    %v1834 = vpack.c.b16 %v1232, %v1225
    %v1835 = vpack.c.b16 %v1233, %v1226
    %v1836 = vpack.c.b16 %v1234, %v1227
    %v1837 = vpack.c.b16 %v1235, %v1228
    %v1838 = vpack.c.b16 %v1236, %v1229
    %v1839 = vpack.c.b16 %v1237, %v1230
    %v1840 = vpack.c.b16 %v1238, %v1231
    %v1841 = vpack.c.b16 %v1246, %v1239
    %v1842 = vpack.c.b16 %v1247, %v1240
    %v1843 = vpack.c.b16 %v1248, %v1241
    %v1844 = vpack.c.b16 %v1249, %v1242
    %v1845 = vpack.c.b16 %v1250, %v1243
    %v1846 = vpack.c.b16 %v1251, %v1244
    %v1847 = vpack.c.b16 %v1252, %v1245
    %v1848 = vpack.c.b16 %v1260, %v1253
    %v1849 = vpack.c.b16 %v1261, %v1254
    %v1850 = vpack.c.b16 %v1262, %v1255
    %v1851 = vpack.c.b16 %v1263, %v1256
    %v1852 = vpack.c.b16 %v1264, %v1257
    %v1853 = vpack.c.b16 %v1265, %v1258
    %v1854 = vpack.c.b16 %v1266, %v1259
    %v1855 = vpack.c.b16 %v1274, %v1267
    %v1856 = vpack.c.b16 %v1275, %v1268
    %v1857 = vpack.c.b16 %v1276, %v1269
    %v1858 = vpack.c.b16 %v1277, %v1270
    %v1859 = vpack.c.b16 %v1278, %v1271
    %v1860 = vpack.c.b16 %v1279, %v1272
    %v1861 = vpack.c.b16 %v1280, %v1273
    %v1862 = vpack.c.b16 %v1288, %v1281
    %v1863 = vpack.c.b16 %v1289, %v1282
    %v1864 = vpack.c.b16 %v1290, %v1283
    %v1865 = vpack.c.b16 %v1291, %v1284
    %v1866 = vpack.c.b16 %v1292, %v1285
    %v1867 = vpack.c.b16 %v1293, %v1286
    %v1868 = vpack.c.b16 %v1294, %v1287
    %v1869 = vpack.c.b16 %v1302, %v1295
    %v1870 = vpack.c.b16 %v1303, %v1296
    %v1871 = vpack.c.b16 %v1304, %v1297
    %v1872 = vpack.c.b16 %v1305, %v1298
    %v1873 = vpack.c.b16 %v1306, %v1299
    %v1874 = vpack.c.b16 %v1307, %v1300
    %v1875 = vpack.c.b16 %v1308, %v1301
    %v1876 = vpack.c.b16 %v1316, %v1309
    %v1877 = vpack.c.b16 %v1317, %v1310
    %v1878 = vpack.c.b16 %v1318, %v1311
    %v1879 = vpack.c.b16 %v1319, %v1312
    %v1880 = vpack.c.b16 %v1320, %v1313
    %v1881 = vpack.c.b16 %v1321, %v1314
    %v1882 = vpack.c.b16 %v1322, %v1315
    %v1883 = vpack.c.b16 %v1330, %v1323
    %v1884 = vpack.c.b16 %v1331, %v1324
    %v1885 = vpack.c.b16 %v1332, %v1325
    %v1886 = vpack.c.b16 %v1333, %v1326
    %v1887 = vpack.c.b16 %v1334, %v1327
    %v1888 = vpack.c.b16 %v1335, %v1328
    %v1889 = vpack.c.b16 %v1336, %v1329
    %v1890 = vpack.c.b16 %v1344, %v1337
    %v1891 = vpack.c.b16 %v1345, %v1338
    %v1892 = vpack.c.b16 %v1346, %v1339
    %v1893 = vpack.c.b16 %v1347, %v1340
    %v1894 = vpack.c.b16 %v1348, %v1341
    %v1895 = vpack.c.b16 %v1349, %v1342
    %v1896 = vpack.c.b16 %v1350, %v1343
    %v1897 = vpack.c.b16 %v1358, %v1351
    %v1898 = vpack.c.b16 %v1359, %v1352
    %v1899 = vpack.c.b16 %v1360, %v1353
    %v1900 = vpack.c.b16 %v1361, %v1354
    %v1901 = vpack.c.b16 %v1362, %v1355
    %v1902 = vpack.c.b16 %v1363, %v1356
    %v1903 = vpack.c.b16 %v1364, %v1357
    %v1904 = vpack.c.b16 %v1372, %v1365
    %v1905 = vpack.c.b16 %v1373, %v1366
    %v1906 = vpack.c.b16 %v1374, %v1367
    %v1907 = vpack.c.b16 %v1375, %v1368
    %v1908 = vpack.c.b16 %v1376, %v1369
    %v1909 = vpack.c.b16 %v1377, %v1370
    %v1910 = vpack.c.b16 %v1378, %v1371
    %v1911 = vpack.c.b16 %v1386, %v1379
    %v1912 = vpack.c.b16 %v1387, %v1380
    %v1913 = vpack.c.b16 %v1388, %v1381
    %v1914 = vpack.c.b16 %v1389, %v1382
    %v1915 = vpack.c.b16 %v1390, %v1383
    %v1916 = vpack.c.b16 %v1391, %v1384
    %v1917 = vpack.c.b16 %v1392, %v1385
    %v1918 = vpack.c.b16 %v1400, %v1393
    %v1919 = vpack.c.b16 %v1401, %v1394
    %v1920 = vpack.c.b16 %v1402, %v1395
    %v1921 = vpack.c.b16 %v1403, %v1396
    %v1922 = vpack.c.b16 %v1404, %v1397
    %v1923 = vpack.c.b16 %v1405, %v1398
    %v1924 = vpack.c.b16 %v1406, %v1399
    %v1925 = vpack.c.b16 %v1414, %v1407
    %v1926 = vpack.c.b16 %v1415, %v1408
    %v1927 = vpack.c.b16 %v1416, %v1409
    %v1928 = vpack.c.b16 %v1417, %v1410
    %v1929 = vpack.c.b16 %v1418, %v1411
    %v1930 = vpack.c.b16 %v1419, %v1412
    %v1931 = vpack.c.b16 %v1420, %v1413
    %v1932 = vpack.c.b16 %v1428, %v1421
    %v1933 = vpack.c.b16 %v1429, %v1422
    %v1934 = vpack.c.b16 %v1430, %v1423
    %v1935 = vpack.c.b16 %v1431, %v1424
    %v1936 = vpack.c.b16 %v1432, %v1425
    %v1937 = vpack.c.b16 %v1433, %v1426
    %v1938 = vpack.c.b16 %v1434, %v1427
    %v1939 = vpack.c.b16 %v1442, %v1435
    %v1940 = vpack.c.b16 %v1443, %v1436
    %v1941 = vpack.c.b16 %v1444, %v1437
    %v1942 = vpack.c.b16 %v1445, %v1438
    %v1943 = vpack.c.b16 %v1446, %v1439
    %v1944 = vpack.c.b16 %v1447, %v1440
    %v1945 = vpack.c.b16 %v1448, %v1441
    %v1946 = vpack.c.b16 %v1456, %v1449
    %v1947 = vpack.c.b16 %v1457, %v1450
    %v1948 = vpack.c.b16 %v1458, %v1451
    %v1949 = vpack.c.b16 %v1459, %v1452
    %v1950 = vpack.c.b16 %v1460, %v1453
    %v1951 = vpack.c.b16 %v1461, %v1454
    %v1952 = vpack.c.b16 %v1462, %v1455
    %v1953 = vpack.c.b16 %v1470, %v1463
    %v1954 = vpack.c.b16 %v1471, %v1464
    %v1955 = vpack.c.b16 %v1472, %v1465
    %v1956 = vpack.c.b16 %v1473, %v1466
    %v1957 = vpack.c.b16 %v1474, %v1467
    %v1958 = vpack.c.b16 %v1475, %v1468
    %v1959 = vpack.c.b16 %v1476, %v1469
    %v1960 = vpack.c.b16 %v1484, %v1477
    %v1961 = vpack.c.b16 %v1485, %v1478
    %v1962 = vpack.c.b16 %v1486, %v1479
    %v1963 = vpack.c.b16 %v1487, %v1480
    %v1964 = vpack.c.b16 %v1488, %v1481
    %v1965 = vpack.c.b16 %v1489, %v1482
    %v1966 = vpack.c.b16 %v1490, %v1483
    %v1967 = vpack.c.b16 %v1498, %v1491
    %v1968 = vpack.c.b16 %v1499, %v1492
    %v1969 = vpack.c.b16 %v1500, %v1493
    %v1970 = vpack.c.b16 %v1501, %v1494
    %v1971 = vpack.c.b16 %v1502, %v1495
    %v1972 = vpack.c.b16 %v1503, %v1496
    %v1973 = vpack.c.b16 %v1504, %v1497
    %v1974 = vpack.c.b16 %v1512, %v1505
    %v1975 = vpack.c.b16 %v1513, %v1506
    %v1976 = vpack.c.b16 %v1514, %v1507
    %v1977 = vpack.c.b16 %v1515, %v1508
    %v1978 = vpack.c.b16 %v1516, %v1509
    %v1979 = vpack.c.b16 %v1517, %v1510
    %v1980 = vpack.c.b16 %v1518, %v1511
    %v1981 = vpack.c.b16 %v1526, %v1519
    %v1982 = vpack.c.b16 %v1527, %v1520
    %v1983 = vpack.c.b16 %v1528, %v1521
    %v1984 = vpack.c.b16 %v1529, %v1522
    %v1985 = vpack.c.b16 %v1530, %v1523
    %v1986 = vpack.c.b16 %v1531, %v1524
    %v1987 = vpack.c.b16 %v1532, %v1525
    %v1988 = vpack.c.b16 %v1540, %v1533
    %v1989 = vpack.c.b16 %v1541, %v1534
    %v1990 = vpack.c.b16 %v1542, %v1535
    %v1991 = vpack.c.b16 %v1543, %v1536
    %v1992 = vpack.c.b16 %v1544, %v1537
    %v1993 = vpack.c.b16 %v1545, %v1538
    %v1994 = vpack.c.b16 %v1546, %v1539
    %v1995 = vpack.c.b16 %v1554, %v1547
    %v1996 = vpack.c.b16 %v1555, %v1548
    %v1997 = vpack.c.b16 %v1556, %v1549
    %v1998 = vpack.c.b16 %v1557, %v1550
    %v1999 = vpack.c.b16 %v1558, %v1551
    %v2000 = vpack.c.b16 %v1559, %v1552
    %v2001 = vpack.c.b16 %v1560, %v1553
    %v2002 = vpack.c.b16 %v1568, %v1561
    %v2003 = vpack.c.b16 %v1569, %v1562
    %v2004 = vpack.c.b16 %v1570, %v1563
    %v2005 = vpack.c.b16 %v1571, %v1564
    %v2006 = vpack.c.b16 %v1572, %v1565
    %v2007 = vpack.c.b16 %v1573, %v1566
    %v2008 = vpack.c.b16 %v1574, %v1567
    %v2009 = vpack.c.b16 %v1582, %v1575
    %v2010 = vpack.c.b16 %v1583, %v1576
    %v2011 = vpack.c.b16 %v1584, %v1577
    %v2012 = vpack.c.b16 %v1585, %v1578
    %v2013 = vpack.c.b16 %v1586, %v1579
    %v2014 = vpack.c.b16 %v1587, %v1580
    %v2015 = vpack.c.b16 %v1588, %v1581
    %v2016 = vpack.c.b16 %v1596, %v1589
    %v2017 = vpack.c.b16 %v1597, %v1590
    %v2018 = vpack.c.b16 %v1598, %v1591
    %v2019 = vpack.c.b16 %v1599, %v1592
    %v2020 = vpack.c.b16 %v1600, %v1593
    %v2021 = vpack.c.b16 %v1601, %v1594
    %v2022 = vpack.c.b16 %v1602, %v1595
    %v2023 = vpack.c.b16 %v1610, %v1603
    %v2024 = vpack.c.b16 %v1611, %v1604
    %v2025 = vpack.c.b16 %v1612, %v1605
    %v2026 = vpack.c.b16 %v1613, %v1606
    %v2027 = vpack.c.b16 %v1614, %v1607
    %v2028 = vpack.c.b16 %v1615, %v1608
    %v2029 = vpack.c.b16 %v1616, %v1609
    %v2030 = vpack.c.b16 %v1624, %v1617
    %v2031 = vpack.c.b16 %v1625, %v1618
    %v2032 = vpack.c.b16 %v1626, %v1619
    %v2033 = vpack.c.b16 %v1627, %v1620
    %v2034 = vpack.c.b16 %v1628, %v1621
    %v2035 = vpack.c.b16 %v1629, %v1622
    %v2036 = vpack.c.b16 %v1630, %v1623
    %v2037 = vpack.c.b16 %v1638, %v1631
    %v2038 = vpack.c.b16 %v1639, %v1632
    %v2039 = vpack.c.b16 %v1640, %v1633
    %v2040 = vpack.c.b16 %v1641, %v1634
    %v2041 = vpack.c.b16 %v1642, %v1635
    %v2042 = vpack.c.b16 %v1643, %v1636
    %v2043 = vpack.c.b16 %v1644, %v1637
    %v2044 = vpack.c.b16 %v1652, %v1645
    %v2045 = vpack.c.b16 %v1653, %v1646
    %v2046 = vpack.c.b16 %v1654, %v1647
    %v2047 = vpack.c.b16 %v1655, %v1648
    %v2048 = vpack.c.b16 %v1656, %v1649
    %v2049 = vpack.c.b16 %v1657, %v1650
    %v2050 = vpack.c.b16 %v1658, %v1651
    %v2051 = vpack.c.b16 %v1666, %v1659
    %v2052 = vpack.c.b16 %v1667, %v1660
    %v2053 = vpack.c.b16 %v1668, %v1661
    %v2054 = vpack.c.b16 %v1669, %v1662
    %v2055 = vpack.c.b16 %v1670, %v1663
    %v2056 = vpack.c.b16 %v1671, %v1664
    %v2057 = vpack.c.b16 %v1672, %v1665
    %v2058 = vpack.c.b16 %v1680, %v1673
    %v2059 = vpack.c.b16 %v1681, %v1674
    %v2060 = vpack.c.b16 %v1682, %v1675
    %v2061 = vpack.c.b16 %v1683, %v1676
    %v2062 = vpack.c.b16 %v1684, %v1677
    %v2063 = vpack.c.b16 %v1685, %v1678
    %v2064 = vpack.c.b16 %v1686, %v1679
    %v2065 = vpack.c.b16 %v1694, %v1687
    %v2066 = vpack.c.b16 %v1695, %v1688
    %v2067 = vpack.c.b16 %v1696, %v1689
    %v2068 = vpack.c.b16 %v1697, %v1690
    %v2069 = vpack.c.b16 %v1698, %v1691
    %v2070 = vpack.c.b16 %v1699, %v1692
    %v2071 = vpack.c.b16 %v1700, %v1693
    %v2072 = vpack.c.b16 %v1708, %v1701
    %v2073 = vpack.c.b16 %v1709, %v1702
    %v2074 = vpack.c.b16 %v1710, %v1703
    %v2075 = vpack.c.b16 %v1711, %v1704
    %v2076 = vpack.c.b16 %v1712, %v1705
    %v2077 = vpack.c.b16 %v1713, %v1706
    %v2078 = vpack.c.b16 %v1714, %v1707
    %v2079 = vpack.c.b16 %v1722, %v1715
    %v2080 = vpack.c.b16 %v1723, %v1716
    %v2081 = vpack.c.b16 %v1724, %v1717
    %v2082 = vpack.c.b16 %v1725, %v1718
    %v2083 = vpack.c.b16 %v1726, %v1719
    %v2084 = vpack.c.b16 %v1727, %v1720
    %v2085 = vpack.c.b16 %v1728, %v1721
    %v2086 = vpack.c.b16 %v1736, %v1729
    %v2087 = vpack.c.b16 %v1737, %v1730
    %v2088 = vpack.c.b16 %v1738, %v1731
    %v2089 = vpack.c.b16 %v1739, %v1732
    %v2090 = vpack.c.b16 %v1740, %v1733
    %v2091 = vpack.c.b16 %v1741, %v1734
    %v2092 = vpack.c.b16 %v1742, %v1735
    %v2093 = vpack.c.b16 %v1750, %v1743
    %v2094 = vpack.c.b16 %v1751, %v1744
    %v2095 = vpack.c.b16 %v1752, %v1745
    %v2096 = vpack.c.b16 %v1753, %v1746
    %v2097 = vpack.c.b16 %v1754, %v1747
    %v2098 = vpack.c.b16 %v1755, %v1748
    %v2099 = vpack.c.b16 %v1756, %v1749
    %vm2443 = vcmask 130048
    %v2445 = vsel %vm2443, %v249, 0
    %2447 = vmatprep.subr.bf16.mxu0 %v1758
    %2448 = vmatpush1.bf16.msra.mxu0 %v1757
    %2449 = vmatprep.subr.bf16.mxu0 %v1765
    %2450 = vmatpush1.bf16.msra.mxu0 %v1764
    %2451 = vmatprep.subr.bf16.mxu0 %v1772
    %2452 = vmatpush1.bf16.msra.mxu0 %v1771
    %2453 = vmatprep.subr.bf16.mxu0 %v1779
    %2454 = vmatpush1.bf16.msra.mxu0 %v1778
    %2455 = vmatprep.subr.bf16.mxu0 %v1786
    %2456 = vmatpush1.bf16.msra.mxu0 %v1785
    %2457 = vmatprep.subr.bf16.mxu0 %v1793
    %2458 = vmatpush1.bf16.msra.mxu0 %v1792
    %2459 = vmatprep.subr.bf16.mxu0 %v1800
    %2460 = vmatpush1.bf16.msra.mxu0 %v1799
    %2461 = vmatprep.subr.bf16.mxu0 %v1807
    %2462 = vmatpush1.bf16.msra.mxu0 %v1806
    %2463 = vmatprep.subr.bf16.mxu0 %v1814
    %2464 = vmatpush1.bf16.msra.mxu0 %v1813
    %2465 = vmatprep.subr.bf16.mxu0 %v1821
    %2466 = vmatpush1.bf16.msra.mxu0 %v1820
    %2467 = vmatprep.subr.bf16.mxu0 %v1828
    %2468 = vmatpush1.bf16.msra.mxu0 %v1827
    %2469 = vmatprep.subr.bf16.mxu0 %v1835
    %2470 = vmatpush1.bf16.msra.mxu0 %v1834
    %2471 = vmatprep.subr.bf16.mxu0 %v1842
    %2472 = vmatpush1.bf16.msra.mxu0 %v1841
    %2473 = vmatprep.subr.bf16.mxu0 %v1849
    %2474 = vmatpush1.bf16.msra.mxu0 %v1848
    %2475 = vmatprep.subr.bf16.mxu0 %v1856
    %2476 = vmatpush1.bf16.msra.mxu0 %v1855
    %2477 = vmatprep.subr.bf16.mxu0 %v1863
    %2478 = vmatpush1.bf16.msra.mxu0 %v1862
    %2479 = vmatprep.mubr.bf16.mxu0 %v244
    %2480 = vmatmul.mubr.bf16.gmra.mrb[0].mxu0 %v243
    %v2481 = vpop.f32.mrb[0].mxu0
    %v2482 = vadd.f32 %v647, %v2481
    %v2483 = vpop.f32.mrb[0].mxu0
    %v2484 = vadd.f32 %v651, %v2483
    %v2485 = vpop.f32.mrb[0].mxu0
    %v2486 = vadd.f32 %v647, %v2485
    %v2487 = vpop.f32.mrb[0].mxu0
    %v2488 = vadd.f32 %v651, %v2487
    %2489 = vdwg.mxu0
    %2490 = vmatprep.subr.bf16.mxu0 %v1870
    %2491 = vmatpush1.bf16.msra.mxu0 %v1869
    %2492 = vmatprep.subr.bf16.mxu0 %v1877
    %2493 = vmatpush1.bf16.msra.mxu0 %v1876
    %2494 = vmatprep.subr.bf16.mxu0 %v1884
    %2495 = vmatpush1.bf16.msra.mxu0 %v1883
    %2496 = vmatprep.subr.bf16.mxu0 %v1891
    %2497 = vmatpush1.bf16.msra.mxu0 %v1890
    %2498 = vmatprep.subr.bf16.mxu0 %v1898
    %2499 = vmatpush1.bf16.msra.mxu0 %v1897
    %2500 = vmatprep.subr.bf16.mxu0 %v1905
    %2501 = vmatpush1.bf16.msra.mxu0 %v1904
    %2502 = vmatprep.subr.bf16.mxu0 %v1912
    %2503 = vmatpush1.bf16.msra.mxu0 %v1911
    %2504 = vmatprep.subr.bf16.mxu0 %v1919
    %2505 = vmatpush1.bf16.msra.mxu0 %v1918
    %2506 = vmatprep.subr.bf16.mxu0 %v1926
    %2507 = vmatpush1.bf16.msra.mxu0 %v1925
    %2508 = vmatprep.subr.bf16.mxu0 %v1933
    %2509 = vmatpush1.bf16.msra.mxu0 %v1932
    %2510 = vmatprep.subr.bf16.mxu0 %v1940
    %2511 = vmatpush1.bf16.msra.mxu0 %v1939
    %2512 = vmatprep.subr.bf16.mxu0 %v1947
    %2513 = vmatpush1.bf16.msra.mxu0 %v1946
    %2514 = vmatprep.subr.bf16.mxu0 %v1954
    %2515 = vmatpush1.bf16.msra.mxu0 %v1953
    %2516 = vmatprep.subr.bf16.mxu0 %v1961
    %2517 = vmatpush1.bf16.msra.mxu0 %v1960
    %2518 = vmatprep.subr.bf16.mxu0 %v1968
    %2519 = vmatpush1.bf16.msra.mxu0 %v1967
    %2520 = vmatprep.subr.bf16.mxu0 %v1975
    %2521 = vmatpush1.bf16.msra.mxu0 %v1974
    %2522 = vmatprep.mubr.bf16.mxu0 %v246
    %2523 = vmatmul.mubr.bf16.gmra.mrb[0].mxu0 %v245
    %v2524 = vpop.f32.mrb[0].mxu0
    %v2525 = vadd.f32 %v2482, %v2524
    %v2526 = vpop.f32.mrb[0].mxu0
    %v2527 = vadd.f32 %v2484, %v2526
    %v2528 = vpop.f32.mrb[0].mxu0
    %v2529 = vadd.f32 %v2486, %v2528
    %v2530 = vpop.f32.mrb[0].mxu0
    %v2531 = vadd.f32 %v2488, %v2530
    %2532 = vdwg.mxu0
    %2533 = vmatprep.subr.bf16.mxu0 %v1982
    %2534 = vmatpush1.bf16.msra.mxu0 %v1981
    %2535 = vmatprep.subr.bf16.mxu0 %v1989
    %2536 = vmatpush1.bf16.msra.mxu0 %v1988
    %2537 = vmatprep.subr.bf16.mxu0 %v1996
    %2538 = vmatpush1.bf16.msra.mxu0 %v1995
    %2539 = vmatprep.subr.bf16.mxu0 %v2003
    %2540 = vmatpush1.bf16.msra.mxu0 %v2002
    %2541 = vmatprep.subr.bf16.mxu0 %v2010
    %2542 = vmatpush1.bf16.msra.mxu0 %v2009
    %2543 = vmatprep.subr.bf16.mxu0 %v2017
    %2544 = vmatpush1.bf16.msra.mxu0 %v2016
    %2545 = vmatprep.subr.bf16.mxu0 %v2024
    %2546 = vmatpush1.bf16.msra.mxu0 %v2023
    %2547 = vmatprep.subr.bf16.mxu0 %v2031
    %2548 = vmatpush1.bf16.msra.mxu0 %v2030
    %2549 = vmatprep.subr.bf16.mxu0 %v2038
    %2550 = vmatpush1.bf16.msra.mxu0 %v2037
    %2551 = vmatprep.subr.bf16.mxu0 %v2045
    %2552 = vmatpush1.bf16.msra.mxu0 %v2044
    %2553 = vmatprep.subr.bf16.mxu0 %v2052
    %2554 = vmatpush1.bf16.msra.mxu0 %v2051
    %2555 = vmatprep.subr.bf16.mxu0 %v2059
    %2556 = vmatpush1.bf16.msra.mxu0 %v2058
    %2557 = vmatprep.subr.bf16.mxu0 %v2066
    %2558 = vmatpush1.bf16.msra.mxu0 %v2065
    %2559 = vmatprep.subr.bf16.mxu0 %v2073
    %2560 = vmatpush1.bf16.msra.mxu0 %v2072
    %2561 = vmatprep.subr.bf16.mxu0 %v2080
    %2562 = vmatpush1.bf16.msra.mxu0 %v2079
    %2563 = vmatprep.subr.bf16.mxu0 %v2087
    %2564 = vmatpush1.bf16.msra.mxu0 %v2086
    %2565 = vmatprep.mubr.bf16.mxu0 %v248
    %2566 = vmatmul.mubr.bf16.gmra.mrb[0].mxu0 %v247
    %v2567 = vpop.f32.mrb[0].mxu0
    %v2568 = vadd.f32 %v2525, %v2567
    %v2569 = vpop.f32.mrb[0].mxu0
    %v2570 = vadd.f32 %v2527, %v2569
    %v2571 = vpop.f32.mrb[0].mxu0
    %v2572 = vadd.f32 %v2529, %v2571
    %v2573 = vpop.f32.mrb[0].mxu0
    %v2574 = vadd.f32 %v2531, %v2573
    %2575 = vdwg.mxu0
    %2576 = vmatprep.subr.bf16.mxu0 %v2094
    %2577 = vmatpush1.bf16.msra.mxu0 %v2093
    %2578 = vmatprep.subr.bf16.mxu0 0
    %2579 = vmatpush1.bf16.msra.mxu0 0
    %2580 = vmatprep.subr.bf16.mxu0 0
    %2581 = vmatpush1.bf16.msra.mxu0 0
    %2582 = vmatprep.subr.bf16.mxu0 0
    %2583 = vmatpush1.bf16.msra.mxu0 0
    %2584 = vmatprep.subr.bf16.mxu0 0
    %2585 = vmatpush1.bf16.msra.mxu0 0
    %2586 = vmatprep.subr.bf16.mxu0 0
    %2587 = vmatpush1.bf16.msra.mxu0 0
    %2588 = vmatprep.subr.bf16.mxu0 0
    %2589 = vmatpush1.bf16.msra.mxu0 0
    %2590 = vmatprep.subr.bf16.mxu0 0
    %2591 = vmatpush1.bf16.msra.mxu0 0
    %2592 = vmatprep.subr.bf16.mxu0 0
    %2593 = vmatpush1.bf16.msra.mxu0 0
    %2594 = vmatprep.subr.bf16.mxu0 0
    %2595 = vmatpush1.bf16.msra.mxu0 0
    %2596 = vmatprep.subr.bf16.mxu0 0
    %2597 = vmatpush1.bf16.msra.mxu0 0
    %2598 = vmatprep.subr.bf16.mxu0 0
    %2599 = vmatpush1.bf16.msra.mxu0 0
    %2600 = vmatprep.subr.bf16.mxu0 0
    %2601 = vmatpush1.bf16.msra.mxu0 0
    %2602 = vmatprep.subr.bf16.mxu0 0
    %2603 = vmatpush1.bf16.msra.mxu0 0
    %2604 = vmatprep.subr.bf16.mxu0 0
    %2605 = vmatpush1.bf16.msra.mxu0 0
    %2606 = vmatprep.subr.bf16.mxu0 0
    %2607 = vmatpush1.bf16.msra.mxu0 0
    %2608 = vmatprep.mubr.bf16.mxu0 0
    %2609 = vmatmul.mubr.bf16.gmra.mrb[0].mxu0 %v2445
    %v2610 = vpop.f32.mrb[0].mxu0
    %v2611 = vadd.f32 %v2568, %v2610
    %v2612 = vpop.f32.mrb[0].mxu0
    %v2613 = vadd.f32 %v2570, %v2612
    %v2614 = vpop.f32.mrb[0].mxu0
    %v2615 = vadd.f32 %v2572, %v2614
    %v2616 = vpop.f32.mrb[0].mxu0
    %v2617 = vadd.f32 %v2574, %v2616
    %2618 = vdwg.mxu0
    %2619 = vmatprep.subr.bf16.mxu0 %v1760
    %2620 = vmatpush1.bf16.msra.mxu0 %v1759
    %2621 = vmatprep.subr.bf16.mxu0 %v1767
    %2622 = vmatpush1.bf16.msra.mxu0 %v1766
    %2623 = vmatprep.subr.bf16.mxu0 %v1774
    %2624 = vmatpush1.bf16.msra.mxu0 %v1773
    %2625 = vmatprep.subr.bf16.mxu0 %v1781
    %2626 = vmatpush1.bf16.msra.mxu0 %v1780
    %2627 = vmatprep.subr.bf16.mxu0 %v1788
    %2628 = vmatpush1.bf16.msra.mxu0 %v1787
    %2629 = vmatprep.subr.bf16.mxu0 %v1795
    %2630 = vmatpush1.bf16.msra.mxu0 %v1794
    %2631 = vmatprep.subr.bf16.mxu0 %v1802
    %2632 = vmatpush1.bf16.msra.mxu0 %v1801
    %2633 = vmatprep.subr.bf16.mxu0 %v1809
    %2634 = vmatpush1.bf16.msra.mxu0 %v1808
    %2635 = vmatprep.subr.bf16.mxu0 %v1816
    %2636 = vmatpush1.bf16.msra.mxu0 %v1815
    %2637 = vmatprep.subr.bf16.mxu0 %v1823
    %2638 = vmatpush1.bf16.msra.mxu0 %v1822
    %2639 = vmatprep.subr.bf16.mxu0 %v1830
    %2640 = vmatpush1.bf16.msra.mxu0 %v1829
    %2641 = vmatprep.subr.bf16.mxu0 %v1837
    %2642 = vmatpush1.bf16.msra.mxu0 %v1836
    %2643 = vmatprep.subr.bf16.mxu0 %v1844
    %2644 = vmatpush1.bf16.msra.mxu0 %v1843
    %2645 = vmatprep.subr.bf16.mxu0 %v1851
    %2646 = vmatpush1.bf16.msra.mxu0 %v1850
    %2647 = vmatprep.subr.bf16.mxu0 %v1858
    %2648 = vmatpush1.bf16.msra.mxu0 %v1857
    %2649 = vmatprep.subr.bf16.mxu0 %v1865
    %2650 = vmatpush1.bf16.msra.mxu0 %v1864
    %2651 = vmatprep.mubr.bf16.mxu0 %v244
    %2652 = vmatmul.mubr.bf16.gmra.mrb[0].mxu0 %v243
    %v2653 = vpop.f32.mrb[0].mxu0
    %v2654 = vadd.f32 %v655, %v2653
    %v2655 = vpop.f32.mrb[0].mxu0
    %v2656 = vadd.f32 %v659, %v2655
    %v2657 = vpop.f32.mrb[0].mxu0
    %v2658 = vadd.f32 %v655, %v2657
    %v2659 = vpop.f32.mrb[0].mxu0
    %v2660 = vadd.f32 %v659, %v2659
    %2661 = vdwg.mxu0
    %2662 = vmatprep.subr.bf16.mxu0 %v1872
    %2663 = vmatpush1.bf16.msra.mxu0 %v1871
    %2664 = vmatprep.subr.bf16.mxu0 %v1879
    %2665 = vmatpush1.bf16.msra.mxu0 %v1878
    %2666 = vmatprep.subr.bf16.mxu0 %v1886
    %2667 = vmatpush1.bf16.msra.mxu0 %v1885
    %2668 = vmatprep.subr.bf16.mxu0 %v1893
    %2669 = vmatpush1.bf16.msra.mxu0 %v1892
    %2670 = vmatprep.subr.bf16.mxu0 %v1900
    %2671 = vmatpush1.bf16.msra.mxu0 %v1899
    %2672 = vmatprep.subr.bf16.mxu0 %v1907
    %2673 = vmatpush1.bf16.msra.mxu0 %v1906
    %2674 = vmatprep.subr.bf16.mxu0 %v1914
    %2675 = vmatpush1.bf16.msra.mxu0 %v1913
    %2676 = vmatprep.subr.bf16.mxu0 %v1921
    %2677 = vmatpush1.bf16.msra.mxu0 %v1920
    %2678 = vmatprep.subr.bf16.mxu0 %v1928
    %2679 = vmatpush1.bf16.msra.mxu0 %v1927
    %2680 = vmatprep.subr.bf16.mxu0 %v1935
    %2681 = vmatpush1.bf16.msra.mxu0 %v1934
    %2682 = vmatprep.subr.bf16.mxu0 %v1942
    %2683 = vmatpush1.bf16.msra.mxu0 %v1941
    %2684 = vmatprep.subr.bf16.mxu0 %v1949
    %2685 = vmatpush1.bf16.msra.mxu0 %v1948
    %2686 = vmatprep.subr.bf16.mxu0 %v1956
    %2687 = vmatpush1.bf16.msra.mxu0 %v1955
    %2688 = vmatprep.subr.bf16.mxu0 %v1963
    %2689 = vmatpush1.bf16.msra.mxu0 %v1962
    %2690 = vmatprep.subr.bf16.mxu0 %v1970
    %2691 = vmatpush1.bf16.msra.mxu0 %v1969
    %2692 = vmatprep.subr.bf16.mxu0 %v1977
    %2693 = vmatpush1.bf16.msra.mxu0 %v1976
    %2694 = vmatprep.mubr.bf16.mxu0 %v246
    %2695 = vmatmul.mubr.bf16.gmra.mrb[0].mxu0 %v245
    %v2696 = vpop.f32.mrb[0].mxu0
    %v2697 = vadd.f32 %v2654, %v2696
    %v2698 = vpop.f32.mrb[0].mxu0
    %v2699 = vadd.f32 %v2656, %v2698
    %v2700 = vpop.f32.mrb[0].mxu0
    %v2701 = vadd.f32 %v2658, %v2700
    %v2702 = vpop.f32.mrb[0].mxu0
    %v2703 = vadd.f32 %v2660, %v2702
    %2704 = vdwg.mxu0
    %2705 = vmatprep.subr.bf16.mxu0 %v1984
    %2706 = vmatpush1.bf16.msra.mxu0 %v1983
    %2707 = vmatprep.subr.bf16.mxu0 %v1991
    %2708 = vmatpush1.bf16.msra.mxu0 %v1990
    %2709 = vmatprep.subr.bf16.mxu0 %v1998
    %2710 = vmatpush1.bf16.msra.mxu0 %v1997
    %2711 = vmatprep.subr.bf16.mxu0 %v2005
    %2712 = vmatpush1.bf16.msra.mxu0 %v2004
    %2713 = vmatprep.subr.bf16.mxu0 %v2012
    %2714 = vmatpush1.bf16.msra.mxu0 %v2011
    %2715 = vmatprep.subr.bf16.mxu0 %v2019
    %2716 = vmatpush1.bf16.msra.mxu0 %v2018
    %2717 = vmatprep.subr.bf16.mxu0 %v2026
    %2718 = vmatpush1.bf16.msra.mxu0 %v2025
    %2719 = vmatprep.subr.bf16.mxu0 %v2033
    %2720 = vmatpush1.bf16.msra.mxu0 %v2032
    %2721 = vmatprep.subr.bf16.mxu0 %v2040
    %2722 = vmatpush1.bf16.msra.mxu0 %v2039
    %2723 = vmatprep.subr.bf16.mxu0 %v2047
    %2724 = vmatpush1.bf16.msra.mxu0 %v2046
    %2725 = vmatprep.subr.bf16.mxu0 %v2054
    %2726 = vmatpush1.bf16.msra.mxu0 %v2053
    %2727 = vmatprep.subr.bf16.mxu0 %v2061
    %2728 = vmatpush1.bf16.msra.mxu0 %v2060
    %2729 = vmatprep.subr.bf16.mxu0 %v2068
    %2730 = vmatpush1.bf16.msra.mxu0 %v2067
    %2731 = vmatprep.subr.bf16.mxu0 %v2075
    %2732 = vmatpush1.bf16.msra.mxu0 %v2074
    %2733 = vmatprep.subr.bf16.mxu0 %v2082
    %2734 = vmatpush1.bf16.msra.mxu0 %v2081
    %2735 = vmatprep.subr.bf16.mxu0 %v2089
    %2736 = vmatpush1.bf16.msra.mxu0 %v2088
    %2737 = vmatprep.mubr.bf16.mxu0 %v248
    %2738 = vmatmul.mubr.bf16.gmra.mrb[0].mxu0 %v247
    %v2739 = vpop.f32.mrb[0].mxu0
    %v2740 = vadd.f32 %v2697, %v2739
    %v2741 = vpop.f32.mrb[0].mxu0
    %v2742 = vadd.f32 %v2699, %v2741
    %v2743 = vpop.f32.mrb[0].mxu0
    %v2744 = vadd.f32 %v2701, %v2743
    %v2745 = vpop.f32.mrb[0].mxu0
    %v2746 = vadd.f32 %v2703, %v2745
    %2747 = vdwg.mxu0
    %2748 = vmatprep.subr.bf16.mxu0 %v2096
    %2749 = vmatpush1.bf16.msra.mxu0 %v2095
    %2750 = vmatprep.subr.bf16.mxu0 0
    %2751 = vmatpush1.bf16.msra.mxu0 0
    %2752 = vmatprep.subr.bf16.mxu0 0
    %2753 = vmatpush1.bf16.msra.mxu0 0
    %2754 = vmatprep.subr.bf16.mxu0 0
    %2755 = vmatpush1.bf16.msra.mxu0 0
    %2756 = vmatprep.subr.bf16.mxu0 0
    %2757 = vmatpush1.bf16.msra.mxu0 0
    %2758 = vmatprep.subr.bf16.mxu0 0
    %2759 = vmatpush1.bf16.msra.mxu0 0
    %2760 = vmatprep.subr.bf16.mxu0 0
    %2761 = vmatpush1.bf16.msra.mxu0 0
    %2762 = vmatprep.subr.bf16.mxu0 0
    %2763 = vmatpush1.bf16.msra.mxu0 0
    %2764 = vmatprep.subr.bf16.mxu0 0
    %2765 = vmatpush1.bf16.msra.mxu0 0
    %2766 = vmatprep.subr.bf16.mxu0 0
    %2767 = vmatpush1.bf16.msra.mxu0 0
    %2768 = vmatprep.subr.bf16.mxu0 0
    %2769 = vmatpush1.bf16.msra.mxu0 0
    %2770 = vmatprep.subr.bf16.mxu0 0
    %2771 = vmatpush1.bf16.msra.mxu0 0
    %2772 = vmatprep.subr.bf16.mxu0 0
    %2773 = vmatpush1.bf16.msra.mxu0 0
    %2774 = vmatprep.subr.bf16.mxu0 0
    %2775 = vmatpush1.bf16.msra.mxu0 0
    %2776 = vmatprep.subr.bf16.mxu0 0
    %2777 = vmatpush1.bf16.msra.mxu0 0
    %2778 = vmatprep.subr.bf16.mxu0 0
    %2779 = vmatpush1.bf16.msra.mxu0 0
    %2780 = vmatprep.mubr.bf16.mxu0 0
    %2781 = vmatmul.mubr.bf16.gmra.mrb[0].mxu0 %v2445
    %v2782 = vpop.f32.mrb[0].mxu0
    %v2783 = vadd.f32 %v2740, %v2782
    %v2784 = vpop.f32.mrb[0].mxu0
    %v2785 = vadd.f32 %v2742, %v2784
    %v2786 = vpop.f32.mrb[0].mxu0
    %v2787 = vadd.f32 %v2744, %v2786
    %v2788 = vpop.f32.mrb[0].mxu0
    %v2789 = vadd.f32 %v2746, %v2788
    %2790 = vdwg.mxu0
    %2791 = vmatprep.subr.bf16.mxu0 %v1762
    %2792 = vmatpush1.bf16.msra.mxu0 %v1761
    %2793 = vmatprep.subr.bf16.mxu0 %v1769
    %2794 = vmatpush1.bf16.msra.mxu0 %v1768
    %2795 = vmatprep.subr.bf16.mxu0 %v1776
    %2796 = vmatpush1.bf16.msra.mxu0 %v1775
    %2797 = vmatprep.subr.bf16.mxu0 %v1783
    %2798 = vmatpush1.bf16.msra.mxu0 %v1782
    %2799 = vmatprep.subr.bf16.mxu0 %v1790
    %2800 = vmatpush1.bf16.msra.mxu0 %v1789
    %2801 = vmatprep.subr.bf16.mxu0 %v1797
    %2802 = vmatpush1.bf16.msra.mxu0 %v1796
    %2803 = vmatprep.subr.bf16.mxu0 %v1804
    %2804 = vmatpush1.bf16.msra.mxu0 %v1803
    %2805 = vmatprep.subr.bf16.mxu0 %v1811
    %2806 = vmatpush1.bf16.msra.mxu0 %v1810
    %2807 = vmatprep.subr.bf16.mxu0 %v1818
    %2808 = vmatpush1.bf16.msra.mxu0 %v1817
    %2809 = vmatprep.subr.bf16.mxu0 %v1825
    %2810 = vmatpush1.bf16.msra.mxu0 %v1824
    %2811 = vmatprep.subr.bf16.mxu0 %v1832
    %2812 = vmatpush1.bf16.msra.mxu0 %v1831
    %2813 = vmatprep.subr.bf16.mxu0 %v1839
    %2814 = vmatpush1.bf16.msra.mxu0 %v1838
    %2815 = vmatprep.subr.bf16.mxu0 %v1846
    %2816 = vmatpush1.bf16.msra.mxu0 %v1845
    %2817 = vmatprep.subr.bf16.mxu0 %v1853
    %2818 = vmatpush1.bf16.msra.mxu0 %v1852
    %2819 = vmatprep.subr.bf16.mxu0 %v1860
    %2820 = vmatpush1.bf16.msra.mxu0 %v1859
    %2821 = vmatprep.subr.bf16.mxu0 %v1867
    %2822 = vmatpush1.bf16.msra.mxu0 %v1866
    %2823 = vmatprep.mubr.bf16.mxu0 %v244
    %2824 = vmatmul.mubr.bf16.gmra.mrb[0].mxu0 %v243
    %v2825 = vpop.f32.mrb[0].mxu0
    %v2826 = vadd.f32 %v663, %v2825
    %v2827 = vpop.f32.mrb[0].mxu0
    %v2828 = vadd.f32 %v667, %v2827
    %v2829 = vpop.f32.mrb[0].mxu0
    %v2830 = vadd.f32 %v663, %v2829
    %v2831 = vpop.f32.mrb[0].mxu0
    %v2832 = vadd.f32 %v667, %v2831
    %2833 = vdwg.mxu0
    %2834 = vmatprep.subr.bf16.mxu0 %v1874
    %2835 = vmatpush1.bf16.msra.mxu0 %v1873
    %2836 = vmatprep.subr.bf16.mxu0 %v1881
    %2837 = vmatpush1.bf16.msra.mxu0 %v1880
    %2838 = vmatprep.subr.bf16.mxu0 %v1888
    %2839 = vmatpush1.bf16.msra.mxu0 %v1887
    %2840 = vmatprep.subr.bf16.mxu0 %v1895
    %2841 = vmatpush1.bf16.msra.mxu0 %v1894
    %2842 = vmatprep.subr.bf16.mxu0 %v1902
    %2843 = vmatpush1.bf16.msra.mxu0 %v1901
    %2844 = vmatprep.subr.bf16.mxu0 %v1909
    %2845 = vmatpush1.bf16.msra.mxu0 %v1908
    %2846 = vmatprep.subr.bf16.mxu0 %v1916
    %2847 = vmatpush1.bf16.msra.mxu0 %v1915
    %2848 = vmatprep.subr.bf16.mxu0 %v1923
    %2849 = vmatpush1.bf16.msra.mxu0 %v1922
    %2850 = vmatprep.subr.bf16.mxu0 %v1930
    %2851 = vmatpush1.bf16.msra.mxu0 %v1929
    %2852 = vmatprep.subr.bf16.mxu0 %v1937
    %2853 = vmatpush1.bf16.msra.mxu0 %v1936
    %2854 = vmatprep.subr.bf16.mxu0 %v1944
    %2855 = vmatpush1.bf16.msra.mxu0 %v1943
    %2856 = vmatprep.subr.bf16.mxu0 %v1951
    %2857 = vmatpush1.bf16.msra.mxu0 %v1950
    %2858 = vmatprep.subr.bf16.mxu0 %v1958
    %2859 = vmatpush1.bf16.msra.mxu0 %v1957
    %2860 = vmatprep.subr.bf16.mxu0 %v1965
    %2861 = vmatpush1.bf16.msra.mxu0 %v1964
    %2862 = vmatprep.subr.bf16.mxu0 %v1972
    %2863 = vmatpush1.bf16.msra.mxu0 %v1971
    %2864 = vmatprep.subr.bf16.mxu0 %v1979
    %2865 = vmatpush1.bf16.msra.mxu0 %v1978
    %2866 = vmatprep.mubr.bf16.mxu0 %v246
    %2867 = vmatmul.mubr.bf16.gmra.mrb[0].mxu0 %v245
    %v2868 = vpop.f32.mrb[0].mxu0
    %v2869 = vadd.f32 %v2826, %v2868
    %v2870 = vpop.f32.mrb[0].mxu0
    %v2871 = vadd.f32 %v2828, %v2870
    %v2872 = vpop.f32.mrb[0].mxu0
    %v2873 = vadd.f32 %v2830, %v2872
    %v2874 = vpop.f32.mrb[0].mxu0
    %v2875 = vadd.f32 %v2832, %v2874
    %2876 = vdwg.mxu0
    %2877 = vmatprep.subr.bf16.mxu0 %v1986
    %2878 = vmatpush1.bf16.msra.mxu0 %v1985
    %2879 = vmatprep.subr.bf16.mxu0 %v1993
    %2880 = vmatpush1.bf16.msra.mxu0 %v1992
    %2881 = vmatprep.subr.bf16.mxu0 %v2000
    %2882 = vmatpush1.bf16.msra.mxu0 %v1999
    %2883 = vmatprep.subr.bf16.mxu0 %v2007
    %2884 = vmatpush1.bf16.msra.mxu0 %v2006
    %2885 = vmatprep.subr.bf16.mxu0 %v2014
    %2886 = vmatpush1.bf16.msra.mxu0 %v2013
    %2887 = vmatprep.subr.bf16.mxu0 %v2021
    %2888 = vmatpush1.bf16.msra.mxu0 %v2020
    %2889 = vmatprep.subr.bf16.mxu0 %v2028
    %2890 = vmatpush1.bf16.msra.mxu0 %v2027
    %2891 = vmatprep.subr.bf16.mxu0 %v2035
    %2892 = vmatpush1.bf16.msra.mxu0 %v2034
    %2893 = vmatprep.subr.bf16.mxu0 %v2042
    %2894 = vmatpush1.bf16.msra.mxu0 %v2041
    %2895 = vmatprep.subr.bf16.mxu0 %v2049
    %2896 = vmatpush1.bf16.msra.mxu0 %v2048
    %2897 = vmatprep.subr.bf16.mxu0 %v2056
    %2898 = vmatpush1.bf16.msra.mxu0 %v2055
    %2899 = vmatprep.subr.bf16.mxu0 %v2063
    %2900 = vmatpush1.bf16.msra.mxu0 %v2062
    %2901 = vmatprep.subr.bf16.mxu0 %v2070
    %2902 = vmatpush1.bf16.msra.mxu0 %v2069
    %2903 = vmatprep.subr.bf16.mxu0 %v2077
    %2904 = vmatpush1.bf16.msra.mxu0 %v2076
    %2905 = vmatprep.subr.bf16.mxu0 %v2084
    %2906 = vmatpush1.bf16.msra.mxu0 %v2083
    %2907 = vmatprep.subr.bf16.mxu0 %v2091
    %2908 = vmatpush1.bf16.msra.mxu0 %v2090
    %2909 = vmatprep.mubr.bf16.mxu0 %v248
    %2910 = vmatmul.mubr.bf16.gmra.mrb[0].mxu0 %v247
    %v2911 = vpop.f32.mrb[0].mxu0
    %v2912 = vadd.f32 %v2869, %v2911
    %v2913 = vpop.f32.mrb[0].mxu0
    %v2914 = vadd.f32 %v2871, %v2913
    %v2915 = vpop.f32.mrb[0].mxu0
    %v2916 = vadd.f32 %v2873, %v2915
    %v2917 = vpop.f32.mrb[0].mxu0
    %v2918 = vadd.f32 %v2875, %v2917
    %2919 = vdwg.mxu0
    %2920 = vmatprep.subr.bf16.mxu0 %v2098
    %2921 = vmatpush1.bf16.msra.mxu0 %v2097
    %2922 = vmatprep.subr.bf16.mxu0 0
    %2923 = vmatpush1.bf16.msra.mxu0 0
    %2924 = vmatprep.subr.bf16.mxu0 0
    %2925 = vmatpush1.bf16.msra.mxu0 0
    %2926 = vmatprep.subr.bf16.mxu0 0
    %2927 = vmatpush1.bf16.msra.mxu0 0
    %2928 = vmatprep.subr.bf16.mxu0 0
    %2929 = vmatpush1.bf16.msra.mxu0 0
    %2930 = vmatprep.subr.bf16.mxu0 0
    %2931 = vmatpush1.bf16.msra.mxu0 0
    %2932 = vmatprep.subr.bf16.mxu0 0
    %2933 = vmatpush1.bf16.msra.mxu0 0
    %2934 = vmatprep.subr.bf16.mxu0 0
    %2935 = vmatpush1.bf16.msra.mxu0 0
    %2936 = vmatprep.subr.bf16.mxu0 0
    %2937 = vmatpush1.bf16.msra.mxu0 0
    %2938 = vmatprep.subr.bf16.mxu0 0
    %2939 = vmatpush1.bf16.msra.mxu0 0
    %2940 = vmatprep.subr.bf16.mxu0 0
    %2941 = vmatpush1.bf16.msra.mxu0 0
    %2942 = vmatprep.subr.bf16.mxu0 0
    %2943 = vmatpush1.bf16.msra.mxu0 0
    %2944 = vmatprep.subr.bf16.mxu0 0
    %2945 = vmatpush1.bf16.msra.mxu0 0
    %2946 = vmatprep.subr.bf16.mxu0 0
    %2947 = vmatpush1.bf16.msra.mxu0 0
    %2948 = vmatprep.subr.bf16.mxu0 0
    %2949 = vmatpush1.bf16.msra.mxu0 0
    %2950 = vmatprep.subr.bf16.mxu0 0
    %2951 = vmatpush1.bf16.msra.mxu0 0
    %2952 = vmatprep.mubr.bf16.mxu0 0
    %2953 = vmatmul.mubr.bf16.gmra.mrb[0].mxu0 %v2445
    %v2954 = vpop.f32.mrb[0].mxu0
    %v2955 = vadd.f32 %v2912, %v2954
    %v2956 = vpop.f32.mrb[0].mxu0
    %v2957 = vadd.f32 %v2914, %v2956
    %v2958 = vpop.f32.mrb[0].mxu0
    %v2959 = vadd.f32 %v2916, %v2958
    %v2960 = vpop.f32.mrb[0].mxu0
    %v2961 = vadd.f32 %v2918, %v2960
    %2962 = vdwg.mxu0
    %2963 = vmatprep.subr.bf16.mxu0 0
    %2964 = vmatpush1.bf16.msra.mxu0 %v1763
    %2965 = vmatprep.subr.bf16.mxu0 0
    %2966 = vmatpush1.bf16.msra.mxu0 %v1770
    %2967 = vmatprep.subr.bf16.mxu0 0
    %2968 = vmatpush1.bf16.msra.mxu0 %v1777
    %2969 = vmatprep.subr.bf16.mxu0 0
    %2970 = vmatpush1.bf16.msra.mxu0 %v1784
    %2971 = vmatprep.subr.bf16.mxu0 0
    %2972 = vmatpush1.bf16.msra.mxu0 %v1791
    %2973 = vmatprep.subr.bf16.mxu0 0
    %2974 = vmatpush1.bf16.msra.mxu0 %v1798
    %2975 = vmatprep.subr.bf16.mxu0 0
    %2976 = vmatpush1.bf16.msra.mxu0 %v1805
    %2977 = vmatprep.subr.bf16.mxu0 0
    %2978 = vmatpush1.bf16.msra.mxu0 %v1812
    %2979 = vmatprep.subr.bf16.mxu0 0
    %2980 = vmatpush1.bf16.msra.mxu0 %v1819
    %2981 = vmatprep.subr.bf16.mxu0 0
    %2982 = vmatpush1.bf16.msra.mxu0 %v1826
    %2983 = vmatprep.subr.bf16.mxu0 0
    %2984 = vmatpush1.bf16.msra.mxu0 %v1833
    %2985 = vmatprep.subr.bf16.mxu0 0
    %2986 = vmatpush1.bf16.msra.mxu0 %v1840
    %2987 = vmatprep.subr.bf16.mxu0 0
    %2988 = vmatpush1.bf16.msra.mxu0 %v1847
    %2989 = vmatprep.subr.bf16.mxu0 0
    %2990 = vmatpush1.bf16.msra.mxu0 %v1854
    %2991 = vmatprep.subr.bf16.mxu0 0
    %2992 = vmatpush1.bf16.msra.mxu0 %v1861
    %2993 = vmatprep.subr.bf16.mxu0 0
    %2994 = vmatpush1.bf16.msra.mxu0 %v1868
    %2995 = vmatprep.mubr.bf16.mxu0 %v244
    %2996 = vmatmul.mubr.bf16.gmra.mrb[0].mxu0 %v243
    %v2997 = vpop.f32.mrb[0].mxu0
    %v2998 = vadd.f32 %v671, %v2997
    %v2999 = vpop.f32.mrb[0].mxu0
    %v3000 = vpop.f32.mrb[0].mxu0
    %v3001 = vadd.f32 %v671, %v3000
    %v3002 = vpop.f32.mrb[0].mxu0
    %3003 = vdwg.mxu0
    %3004 = vmatprep.subr.bf16.mxu0 0
    %3005 = vmatpush1.bf16.msra.mxu0 %v1875
    %3006 = vmatprep.subr.bf16.mxu0 0
    %3007 = vmatpush1.bf16.msra.mxu0 %v1882
    %3008 = vmatprep.subr.bf16.mxu0 0
    %3009 = vmatpush1.bf16.msra.mxu0 %v1889
    %3010 = vmatprep.subr.bf16.mxu0 0
    %3011 = vmatpush1.bf16.msra.mxu0 %v1896
    %3012 = vmatprep.subr.bf16.mxu0 0
    %3013 = vmatpush1.bf16.msra.mxu0 %v1903
    %3014 = vmatprep.subr.bf16.mxu0 0
    %3015 = vmatpush1.bf16.msra.mxu0 %v1910
    %3016 = vmatprep.subr.bf16.mxu0 0
    %3017 = vmatpush1.bf16.msra.mxu0 %v1917
    %3018 = vmatprep.subr.bf16.mxu0 0
    %3019 = vmatpush1.bf16.msra.mxu0 %v1924
    %3020 = vmatprep.subr.bf16.mxu0 0
    %3021 = vmatpush1.bf16.msra.mxu0 %v1931
    %3022 = vmatprep.subr.bf16.mxu0 0
    %3023 = vmatpush1.bf16.msra.mxu0 %v1938
    %3024 = vmatprep.subr.bf16.mxu0 0
    %3025 = vmatpush1.bf16.msra.mxu0 %v1945
    %3026 = vmatprep.subr.bf16.mxu0 0
    %3027 = vmatpush1.bf16.msra.mxu0 %v1952
    %3028 = vmatprep.subr.bf16.mxu0 0
    %3029 = vmatpush1.bf16.msra.mxu0 %v1959
    %3030 = vmatprep.subr.bf16.mxu0 0
    %3031 = vmatpush1.bf16.msra.mxu0 %v1966
    %3032 = vmatprep.subr.bf16.mxu0 0
    %3033 = vmatpush1.bf16.msra.mxu0 %v1973
    %3034 = vmatprep.subr.bf16.mxu0 0
    %3035 = vmatpush1.bf16.msra.mxu0 %v1980
    %3036 = vmatprep.mubr.bf16.mxu0 %v246
    %3037 = vmatmul.mubr.bf16.gmra.mrb[0].mxu0 %v245
    %v3038 = vpop.f32.mrb[0].mxu0
    %v3039 = vadd.f32 %v2998, %v3038
    %v3040 = vpop.f32.mrb[0].mxu0
    %v3041 = vpop.f32.mrb[0].mxu0
    %v3042 = vadd.f32 %v3001, %v3041
    %v3043 = vpop.f32.mrb[0].mxu0
    %3044 = vdwg.mxu0
    %3045 = vmatprep.subr.bf16.mxu0 0
    %3046 = vmatpush1.bf16.msra.mxu0 %v1987
    %3047 = vmatprep.subr.bf16.mxu0 0
    %3048 = vmatpush1.bf16.msra.mxu0 %v1994
    %3049 = vmatprep.subr.bf16.mxu0 0
    %3050 = vmatpush1.bf16.msra.mxu0 %v2001
    %3051 = vmatprep.subr.bf16.mxu0 0
    %3052 = vmatpush1.bf16.msra.mxu0 %v2008
    %3053 = vmatprep.subr.bf16.mxu0 0
    %3054 = vmatpush1.bf16.msra.mxu0 %v2015
    %3055 = vmatprep.subr.bf16.mxu0 0
    %3056 = vmatpush1.bf16.msra.mxu0 %v2022
    %3057 = vmatprep.subr.bf16.mxu0 0
    %3058 = vmatpush1.bf16.msra.mxu0 %v2029
    %3059 = vmatprep.subr.bf16.mxu0 0
    %3060 = vmatpush1.bf16.msra.mxu0 %v2036
    %3061 = vmatprep.subr.bf16.mxu0 0
    %3062 = vmatpush1.bf16.msra.mxu0 %v2043
    %3063 = vmatprep.subr.bf16.mxu0 0
    %3064 = vmatpush1.bf16.msra.mxu0 %v2050
    %3065 = vmatprep.subr.bf16.mxu0 0
    %3066 = vmatpush1.bf16.msra.mxu0 %v2057
    %3067 = vmatprep.subr.bf16.mxu0 0
    %3068 = vmatpush1.bf16.msra.mxu0 %v2064
    %3069 = vmatprep.subr.bf16.mxu0 0
    %3070 = vmatpush1.bf16.msra.mxu0 %v2071
    %3071 = vmatprep.subr.bf16.mxu0 0
    %3072 = vmatpush1.bf16.msra.mxu0 %v2078
    %3073 = vmatprep.subr.bf16.mxu0 0
    %3074 = vmatpush1.bf16.msra.mxu0 %v2085
    %3075 = vmatprep.subr.bf16.mxu0 0
    %3076 = vmatpush1.bf16.msra.mxu0 %v2092
    %3077 = vmatprep.mubr.bf16.mxu0 %v248
    %3078 = vmatmul.mubr.bf16.gmra.mrb[0].mxu0 %v247
    %v3079 = vpop.f32.mrb[0].mxu0
    %v3080 = vadd.f32 %v3039, %v3079
    %v3081 = vpop.f32.mrb[0].mxu0
    %v3082 = vpop.f32.mrb[0].mxu0
    %v3083 = vadd.f32 %v3042, %v3082
    %v3084 = vpop.f32.mrb[0].mxu0
    %3085 = vdwg.mxu0
    %3086 = vmatprep.subr.bf16.mxu0 0
    %3087 = vmatpush1.bf16.msra.mxu0 %v2099
    %3088 = vmatprep.subr.bf16.mxu0 0
    %3089 = vmatpush1.bf16.msra.mxu0 0
    %3090 = vmatprep.subr.bf16.mxu0 0
    %3091 = vmatpush1.bf16.msra.mxu0 0
    %3092 = vmatprep.subr.bf16.mxu0 0
    %3093 = vmatpush1.bf16.msra.mxu0 0
    %3094 = vmatprep.subr.bf16.mxu0 0
    %3095 = vmatpush1.bf16.msra.mxu0 0
    %3096 = vmatprep.subr.bf16.mxu0 0
    %3097 = vmatpush1.bf16.msra.mxu0 0
    %3098 = vmatprep.subr.bf16.mxu0 0
    %3099 = vmatpush1.bf16.msra.mxu0 0
    %3100 = vmatprep.subr.bf16.mxu0 0
    %3101 = vmatpush1.bf16.msra.mxu0 0
    %3102 = vmatprep.subr.bf16.mxu0 0
    %3103 = vmatpush1.bf16.msra.mxu0 0
    %3104 = vmatprep.subr.bf16.mxu0 0
    %3105 = vmatpush1.bf16.msra.mxu0 0
    %3106 = vmatprep.subr.bf16.mxu0 0
    %3107 = vmatpush1.bf16.msra.mxu0 0
    %3108 = vmatprep.subr.bf16.mxu0 0
    %3109 = vmatpush1.bf16.msra.mxu0 0
    %3110 = vmatprep.subr.bf16.mxu0 0
    %3111 = vmatpush1.bf16.msra.mxu0 0
    %3112 = vmatprep.subr.bf16.mxu0 0
    %3113 = vmatpush1.bf16.msra.mxu0 0
    %3114 = vmatprep.subr.bf16.mxu0 0
    %3115 = vmatpush1.bf16.msra.mxu0 0
    %3116 = vmatprep.subr.bf16.mxu0 0
    %3117 = vmatpush1.bf16.msra.mxu0 0
    %3118 = vmatprep.mubr.bf16.mxu0 0
    %3119 = vmatmul.mubr.bf16.gmra.mrb[0].mxu0 %v2445
    %v3120 = vpop.f32.mrb[0].mxu0
    %v3121 = vadd.f32 %v3080, %v3120
    %v3122 = vpop.f32.mrb[0].mxu0
    %v3123 = vpop.f32.mrb[0].mxu0
    %v3124 = vadd.f32 %v3083, %v3123
    %v3125 = vpop.f32.mrb[0].mxu0
    %3126 = vdwg.mxu0
    %v3141 = vcombine.low %v2611, %v2613
    %v3142 = vcombine.high %v2611, %v2613
    %v3143 = vcombine.low %v2783, %v2785
    %v3144 = vcombine.high %v2783, %v2785
    %v3146 = vunpack.c.l.s4 1983009808
    %v3147 = vunpack.c.0.s8 %v3146
    %v3148 = vlaneseq
    %v3149 = vshrl.u32 %v3148, 7
    %v3150 = vsub.s32 %v3147, %v3149
    %v3151 = vrot.slane %v3141, %v3150
    %v3153 = vunpack.c.l.s4 1983009808
    %v3154 = vunpack.c.0.s8 %v3153
    %v3155 = vlaneseq
    %v3156 = vshrl.u32 %v3155, 7
    %v3157 = vsub.s32 %v3154, %v3156
    %v3158 = vrot.slane %v3142, %v3157
    %v3160 = vunpack.c.l.s4 1983009808
    %v3161 = vunpack.c.0.s8 %v3160
    %v3162 = vlaneseq
    %v3163 = vshrl.u32 %v3162, 7
    %v3164 = vsub.s32 %v3161, %v3163
    %v3165 = vrot.slane %v3143, %v3164
    %v3167 = vunpack.c.l.s4 1983009808
    %v3168 = vunpack.c.0.s8 %v3167
    %v3169 = vlaneseq
    %v3170 = vshrl.u32 %v3169, 7
    %v3171 = vsub.s32 %v3168, %v3170
    %v3172 = vrot.slane %v3144, %v3171
    %v3173 = vcombine.low %v3151, %v3165
    %v3174 = vcombine.high %v3151, %v3165
    %v3175 = vcombine.low %v3158, %v3172
    %v3176 = vcombine.high %v3158, %v3172
    %v3177 = vcombine.low %v2955, %v2957
    %v3178 = vcombine.high %v2955, %v2957
    %v3179 = vcombine.high %v3121, %v3121
    %v3181 = vunpack.c.l.s4 1983009808
    %v3182 = vunpack.c.0.s8 %v3181
    %v3183 = vlaneseq
    %v3184 = vshrl.u32 %v3183, 7
    %v3185 = vsub.s32 %v3182, %v3184
    %v3186 = vrot.slane %v3177, %v3185
    %v3188 = vunpack.c.l.s4 1983009808
    %v3189 = vunpack.c.0.s8 %v3188
    %v3190 = vlaneseq
    %v3191 = vshrl.u32 %v3190, 7
    %v3192 = vsub.s32 %v3189, %v3191
    %v3193 = vrot.slane %v3178, %v3192
    %v3195 = vunpack.c.l.s4 1983009808
    %v3196 = vunpack.c.0.s8 %v3195
    %v3197 = vlaneseq
    %v3198 = vshrl.u32 %v3197, 7
    %v3199 = vsub.s32 %v3196, %v3198
    %v3200 = vrot.slane %v3121, %v3199
    %v3202 = vunpack.c.l.s4 1983009808
    %v3203 = vunpack.c.0.s8 %v3202
    %v3204 = vlaneseq
    %v3205 = vshrl.u32 %v3204, 7
    %v3206 = vsub.s32 %v3203, %v3205
    %v3207 = vrot.slane %v3179, %v3206
    %v3208 = vcombine.low %v3186, %v3200
    %v3209 = vcombine.high %v3186, %v3200
    %v3210 = vcombine.low %v3193, %v3207
    %v3211 = vcombine.high %v3193, %v3207
    %v3212 = vcombine.low %v2615, %v2617
    %v3213 = vcombine.high %v2615, %v2617
    %v3214 = vcombine.low %v2787, %v2789
    %v3215 = vcombine.high %v2787, %v2789
    %v3217 = vunpack.c.l.s4 1983009808
    %v3218 = vunpack.c.0.s8 %v3217
    %v3219 = vlaneseq
    %v3220 = vshrl.u32 %v3219, 7
    %v3221 = vsub.s32 %v3218, %v3220
    %v3222 = vrot.slane %v3212, %v3221
    %v3224 = vunpack.c.l.s4 1983009808
    %v3225 = vunpack.c.0.s8 %v3224
    %v3226 = vlaneseq
    %v3227 = vshrl.u32 %v3226, 7
    %v3228 = vsub.s32 %v3225, %v3227
    %v3229 = vrot.slane %v3213, %v3228
    %v3231 = vunpack.c.l.s4 1983009808
    %v3232 = vunpack.c.0.s8 %v3231
    %v3233 = vlaneseq
    %v3234 = vshrl.u32 %v3233, 7
    %v3235 = vsub.s32 %v3232, %v3234
    %v3236 = vrot.slane %v3214, %v3235
    %v3238 = vunpack.c.l.s4 1983009808
    %v3239 = vunpack.c.0.s8 %v3238
    %v3240 = vlaneseq
    %v3241 = vshrl.u32 %v3240, 7
    %v3242 = vsub.s32 %v3239, %v3241
    %v3243 = vrot.slane %v3215, %v3242
    %v3244 = vcombine.low %v3222, %v3236
    %v3245 = vcombine.high %v3222, %v3236
    %v3246 = vcombine.low %v3229, %v3243
    %v3247 = vcombine.high %v3229, %v3243
    %v3248 = vcombine.low %v2959, %v2961
    %v3249 = vcombine.high %v2959, %v2961
    %v3250 = vcombine.high %v3124, %v3124
    %v3252 = vunpack.c.l.s4 1983009808
    %v3253 = vunpack.c.0.s8 %v3252
    %v3254 = vlaneseq
    %v3255 = vshrl.u32 %v3254, 7
    %v3256 = vsub.s32 %v3253, %v3255
    %v3257 = vrot.slane %v3248, %v3256
    %v3259 = vunpack.c.l.s4 1983009808
    %v3260 = vunpack.c.0.s8 %v3259
    %v3261 = vlaneseq
    %v3262 = vshrl.u32 %v3261, 7
    %v3263 = vsub.s32 %v3260, %v3262
    %v3264 = vrot.slane %v3249, %v3263
    %v3266 = vunpack.c.l.s4 1983009808
    %v3267 = vunpack.c.0.s8 %v3266
    %v3268 = vlaneseq
    %v3269 = vshrl.u32 %v3268, 7
    %v3270 = vsub.s32 %v3267, %v3269
    %v3271 = vrot.slane %v3124, %v3270
    %v3273 = vunpack.c.l.s4 1983009808
    %v3274 = vunpack.c.0.s8 %v3273
    %v3275 = vlaneseq
    %v3276 = vshrl.u32 %v3275, 7
    %v3277 = vsub.s32 %v3274, %v3276
    %v3278 = vrot.slane %v3250, %v3277
    %v3279 = vcombine.low %v3257, %v3271
    %v3280 = vcombine.high %v3257, %v3271
    %v3281 = vcombine.low %v3264, %v3278
    %v3282 = vcombine.high %v3264, %v3278
    %3299 = vst [vmem:[#allocation8] sm:$0xff] %v3173
    %vm3300 = vcmask 1041408
    %vm3301 = vcmask 1043458
    %vm3302 = vmor %vm3301, %vm3300
    %vm3303 = vcmask 128004
    %vm3304 = vmor %vm3303, %vm3302
    %3305 = vst.msk [vmem:[#allocation8 + $0x8] sm:$0x3f] %vm3304, %v3208
    %3306 = vst [vmem:[#allocation8 + $0xe] sm:$0xff] %v3174
    %3307 = vst.msk [vmem:[#allocation8 + $0x16] sm:$0x3f] %vm3304, %v3209
    %3308 = vst [vmem:[#allocation8 + $0x1c] sm:$0xff] %v3175
    %3309 = vst.msk [vmem:[#allocation8 + $0x24] sm:$0x3f] %vm3304, %v3210
    %3310 = vst [vmem:[#allocation8 + $0x2a] sm:$0xff] %v3176
    %3311 = vst.msk [vmem:[#allocation8 + $0x32] sm:$0x3f] %vm3304, %v3211
    %3312 = vst [vmem:[#allocation8 + $0x38] sm:$0xff] %v3244
    %3313 = vst.msk [vmem:[#allocation8 + $0x40] sm:$0x3f] %vm3304, %v3279
    %3314 = vst [vmem:[#allocation8 + $0x46] sm:$0xff] %v3245
    %3315 = vst.msk [vmem:[#allocation8 + $0x4e] sm:$0x3f] %vm3304, %v3280
    %3316 = vst [vmem:[#allocation8 + $0x54] sm:$0xff] %v3246
    %3317 = vst.msk [vmem:[#allocation8 + $0x5c] sm:$0x3f] %vm3304, %v3281
    %3318 = vst [vmem:[#allocation8 + $0x62] sm:$0xff] %v3247
    %3319 = vst.msk [vmem:[#allocation8 + $0x6a] sm:$0x3f] %vm3304, %v3282
    // Predicated region
    $region26: #{tpu_custom_call.1} parent=1 // pred_check
      _
    $region27: #{tpu_custom_call.1} parent=1 // pred_check_branch
      %3321 = sbr.rel (0) target = $region29
    $region28: #{tpu_custom_call.1} parent=1 // pred_region
      %s3323 = ssub.s32 1792, 224
      %3324 = vsyncadd [#allocation4], %s3323
      %s3325 = sshll.u32 [#allocation8], 4
      %s3326 = int_to_ptr.vmem [resolvable:$true] %s3325
      %3331 = dma.vmem_to_hbm [thread:$0]  %s3326, 224, %s3, [#allocation4], 224, 224, 14
    $region29: #{tpu_custom_call.1} parent=1 // pred_fallthru
      _
    // Predicated region
    $region30: #{tpu_custom_call.1} parent=1 // pred_check
      _
    $region31: #{tpu_custom_call.1} parent=1 // pred_check_branch
      %3333 = sbr.rel (0) target = $region33
    $region32: #{tpu_custom_call.1} parent=1 // pred_region
      %3334 = dma.done [#allocation4], 1792
    $region33: #{tpu_custom_call.1} parent=1 // pred_fallthru
      _
    %3335 = vsyncpa [#allocation3], 1
    %3336 = vsyncpa [#allocation6], 1
    %3337 = vsyncpa [#allocation4], 1

</llo_original>
